<compile_context>
chip_gen: v5e
topology: v5e:2x2
jax: 0.10.0
libtpu: 0.0.40
codegen_flags: <defaults>
</compile_context>

<pallas_src>
import jax
import jax.numpy as jnp
from jax import lax
from jax.experimental import pallas as pl
from jax.experimental.pallas import tpu as pltpu

EPS = 1e-5


def _vmem_limit_bytes():
    """Generation-aware VMEM cap: ~3/4 of physical (96 MiB v5e/v6e, 48 MiB v7x)."""
    try:
        cap = int(pltpu.get_tpu_info().vmem_capacity_bytes)
    except Exception:
        cap = 64 * 1024 * 1024
    return cap * 3 // 4


def _round_up(x, m):
    return -(-x // m) * m


def _pick_row_tile(h, w, cin, cout, in_bytes, budget_bytes):
    """Largest divisor of H whose per-tile im2col working set fits the budget."""
    # patch (+concat temps, ~3x) in compute dtype + y / y.T in f32 (~3x slack)
    per_row = w * (9 * cin * in_bytes * 3 + cout * 4 * 3)
    max_rows = max(1, budget_bytes // max(per_row, 1))
    for tr in range(min(h, max_rows), 0, -1):
        if h % tr == 0:
            return tr
    return 1


def _pick_hw_tile(hw, cout, bytes_per_col, budget_bytes):
    """Lane-dense (multiple-of-128) pass-2 HW tile sized from a VMEM byte budget."""
    if hw % 128 != 0 or hw <= 512:
        # Small / awkward spatial sizes: one full-extent block (always legal —
        # block dim equal to the array dim).
        return hw
    per_col = max(1, cout * bytes_per_col * 4)  # in + out, double buffered
    t = max(128, (budget_bytes // per_col) // 128 * 128)
    return min(t, hw)


def _make_conv_stats_kernel(h, w, cin, cout, tr, out_dtype):
    """Pass 1: 3x3 conv via per-row-tile im2col matmul + per-image BN partials."""
    n_tiles = h // tr
    tile_n = tr * w

    def kernel(x_ref, w_ref, conv_ref, stats_ref):
        # x_ref:     (1, H+2, W+2, Cin)  padded NHWC image for batch element n
        # w_ref:     (9*Cin, Cout)       3x3 weights, tap-major K
        # conv_ref:  (1, Cout, H*W)      channel-major conv output (lane-dense)
        # stats_ref: (1, 2, Cout)        per-image [mean, M2] in f32
        wmat = w_ref[...]

        def tile_body(t, carry):
            mean_acc, m2_acc = carry
            r0 = t * tr
            # Rows [r0, r0+tr) of the output need padded rows [r0, r0+tr+2).
            rows = x_ref[0, pl.ds(r0, tr + 2), :, :]          # (tr+2, W+2, Cin)
            taps = []
            for kh in range(3):
                for kw in range(3):
                    taps.append(rows[kh:kh + tr, kw:kw + w, :])
            patch = jnp.concatenate(taps, axis=-1).reshape(tile_n, 9 * cin)
            y = jnp.dot(patch, wmat,
                        preferred_element_type=jnp.float32)    # (tile_n, Cout) f32

            # Per-tile centred stats (well conditioned), Chan-merged across tiles.
            mean_t = jnp.mean(y, axis=0, keepdims=True)
            m2_t = jnp.sum(jnp.square(y - mean_t), axis=0, keepdims=True)
            n_a = (t * tile_n).astype(jnp.float32)
            n_b = jnp.float32(tile_n)
            n_ab = n_a + n_b
            delta = mean_t - mean_acc
            mean_new = mean_acc + delta * (n_b / n_ab)
            m2_new = m2_acc + m2_t + jnp.square(delta) * (n_a * n_b / n_ab)

            # Channel-major store: last dim = tile_n (lane-dense when 128|tile_n).
            start = t * tile_n
            if tile_n % 128 == 0:
                start = pl.multiple_of(start, 128)
            conv_ref[0, :, pl.ds(start, tile_n)] = y.T.astype(out_dtype)
            return (mean_new, m2_new)

        zeros = jnp.zeros((1, cout), jnp.float32)
        mean_i, m2_i = lax.fori_loop(0, n_tiles, tile_body, (zeros, zeros))
        stats_ref[0] = jnp.concatenate([mean_i, m2_i], axis=0)   # (2, Cout)

    return kernel


def _bn_relu_kernel(conv_ref, scale_ref, shift_ref, o_ref):
    # conv_ref: (1, Cout, T)   scale/shift: (Cout, 1) f32   o_ref: (1, Cout, T)
    y = conv_ref[...].astype(jnp.float32) * scale_ref[...] + shift_ref[...]
    o_ref[...] = jnp.maximum(y, 0.0).astype(o_ref.dtype)


def conv_bn_relu(x_nchw, w_oihw, b, gamma, beta, *, compute_dtype=jnp.bfloat16):
    """x_nchw: (N, Cin, H, W). Returns (N, Cout, H, W), matching the PyTorch module.

    compute_dtype=bf16 (default) uses MXU-native inputs with f32 accumulation and
    a bf16 conv intermediate; compute_dtype=float32 matches the f32 ref to 1e-4.
    """
    N, Cin, H, W = x_nchw.shape
    Cout = w_oihw.shape[0]
    HW = H * W
    del b  # no-op under training-mode BN (batch mean is subtracted right after)

    cdt = jnp.dtype(compute_dtype)
    conv_dtype = cdt                      # bf16 intermediate when computing in bf16
    in_bytes = cdt.itemsize
    vmem_limit = _vmem_limit_bytes()
    Cout_p = _round_up(Cout, 8)           # sublane-aligned channel-major stores

    # ---- layout glue (allowed to fuse into pass 1 via allow_input_fusion) ----
    x_pad = jnp.pad(jnp.transpose(x_nchw, (0, 2, 3, 1)),
                    ((0, 0), (1, 1), (1, 1), (0, 0))).astype(cdt)
    # (Cout, Cin, 3, 3) -> (3, 3, Cin, Cout) -> (9*Cin, Cout_p)  (tap-major K)
    w_flat = jnp.transpose(w_oihw, (2, 3, 1, 0)).reshape(9 * Cin, Cout)
    if Cout_p != Cout:
        w_flat = jnp.pad(w_flat, ((0, 0), (0, Cout_p - Cout)))
    w_flat = w_flat.astype(cdt)

    TR = _pick_row_tile(H, W, Cin, Cout_p, in_bytes, vmem_limit // 4)

    # ---- Pass 1: conv + per-image partial BN stats (parallel over N) ---------
    conv_t, stats = pl.pallas_call(
        _make_conv_stats_kernel(H, W, Cin, Cout_p, TR, conv_dtype),
        out_shape=(jax.ShapeDtypeStruct((N, Cout_p, HW), conv_dtype),
                   jax.ShapeDtypeStruct((N, 2, Cout_p), jnp.float32)),
        grid_spec=pltpu.PrefetchScalarGridSpec(
            num_scalar_prefetch=0,
            grid=(N,),
            in_specs=[
                pl.BlockSpec((1, H + 2, W + 2, Cin), lambda n: (n, 0, 0, 0)),
                pl.BlockSpec((9 * Cin, Cout_p), lambda n: (0, 0)),
            ],
            out_specs=[
                pl.BlockSpec((1, Cout_p, HW), lambda n: (n, 0, 0)),
                pl.BlockSpec((1, 2, Cout_p), lambda n: (n, 0, 0)),
            ],
        ),
        compiler_params=pltpu.CompilerParams(
            dimension_semantics=("parallel",),        # no shared accumulator -> megacore-safe
            vmem_limit_bytes=vmem_limit,
            allow_input_fusion=[True, True],          # fold transpose/pad/cast into the call
        ),
    )(x_pad, w_flat)

    # ---- Chan-merge per-image (mean, M2) -> global BN scale/shift (O(N*Cout)) -
    means = stats[:, 0, :]                            # (N, Cout_p)
    m2s = stats[:, 1, :]
    mean = jnp.mean(means, axis=0)
    m2 = jnp.sum(m2s, axis=0) + jnp.float32(HW) * jnp.sum(
        jnp.square(means - mean[None, :]), axis=0)
    var = m2 / jnp.float32(N * HW)                    # biased var (PyTorch training BN)
    gamma_p = jnp.pad(gamma.astype(jnp.float32), (0, Cout_p - Cout))
    beta_p = jnp.pad(beta.astype(jnp.float32), (0, Cout_p - Cout))
    scale = gamma_p * lax.rsqrt(var + EPS)
    shift = beta_p - mean * scale
    scale2 = scale.reshape(Cout_p, 1)
    shift2 = shift.reshape(Cout_p, 1)

    # ---- Pass 2: y = max(conv*scale + shift, 0), lane-dense tiles ------------
    T = _pick_hw_tile(HW, Cout_p, jnp.dtype(conv_dtype).itemsize, vmem_limit // 8)
    out = pl.pallas_call(
        _bn_relu_kernel,
        out_shape=jax.ShapeDtypeStruct((N, Cout_p, HW), x_nchw.dtype),
        grid_spec=pltpu.PrefetchScalarGridSpec(
            num_scalar_prefetch=0,
            grid=(N, pl.cdiv(HW, T)),
            in_specs=[
                pl.BlockSpec((1, Cout_p, T), lambda n, t: (n, 0, t)),
                pl.BlockSpec((Cout_p, 1), lambda n, t: (0, 0)),
                pl.BlockSpec((Cout_p, 1), lambda n, t: (0, 0)),
            ],
            out_specs=pl.BlockSpec((1, Cout_p, T), lambda n, t: (n, 0, t)),
        ),
        compiler_params=pltpu.CompilerParams(
            dimension_semantics=("parallel", "parallel"),   # 2 TCs on v7x
            vmem_limit_bytes=vmem_limit,
        ),
    )(conv_t, scale2, shift2)

    # Channel-major intermediate means this is just a reshape (+ channel slice
    # only when Cout had to be padded).
    out = out.reshape(N, Cout_p, H, W)
    if Cout_p != Cout:
        out = out[:, :Cout]
    return out


def reference(x_nchw, w_oihw, b, gamma, beta):
    """Pure-JAX reference matching the PyTorch forward (training-mode BN)."""
    y = lax.conv_general_dilated(
        x_nchw.astype(jnp.float32), w_oihw.astype(jnp.float32),
        window_strides=(1, 1), padding=((1, 1), (1, 1)),
        dimension_numbers=("NCHW", "OIHW", "NCHW"))
    y = y + b.reshape(1, -1, 1, 1)
    mean = jnp.mean(y, axis=(0, 2, 3), keepdims=True)
    var = jnp.mean((y - mean) ** 2, axis=(0, 2, 3), keepdims=True)
    y = (y - mean) * lax.rsqrt(var + EPS)
    y = gamma.reshape(1, -1, 1, 1) * y + beta.reshape(1, -1, 1, 1)
    return jnp.maximum(y, 0.0)


if __name__ == "__main__":
    # Small shapes consistent with the module: batch=2, in_channels=4,
    # out_channels=8, spatial=16x16.
    N, Cin, Cout, H, W = 2, 4, 8, 16, 16

    key = jax.random.PRNGKey(0)
    kx, kw, kb = jax.random.split(key, 3)
    x = jax.random.normal(kx, (N, Cin, H, W), dtype=jnp.float32)
    w = jax.random.normal(kw, (Cout, Cin, 3, 3), dtype=jnp.float32) * 0.1
    b = jax.random.normal(kb, (Cout,), dtype=jnp.float32) * 0.1
    gamma = jnp.ones((Cout,), dtype=jnp.float32)   # BN weight default
    beta = jnp.zeros((Cout,), dtype=jnp.float32)   # BN bias default

    ref = jax.block_until_ready(reference(x, w, b, gamma, beta))

    # Strict check on the f32 path.
    out_f32 = jax.block_until_ready(
        conv_bn_relu(x, w, b, gamma, beta, compute_dtype=jnp.float32))
    assert out_f32.shape == (N, Cout, H, W)
    err32 = float(jnp.max(jnp.abs(out_f32 - ref)))
    assert jnp.allclose(out_f32, ref, atol=1e-4, rtol=1e-4), err32

    # Default bf16 path (MXU-native inputs + bf16 intermediate), looser tolerance.
    out_bf16 = jax.block_until_ready(conv_bn_relu(x, w, b, gamma, beta))
    assert out_bf16.shape == (N, Cout, H, W)
    err16 = float(jnp.max(jnp.abs(out_bf16 - ref)))
    assert jnp.allclose(out_bf16, ref, atol=1e-1, rtol=1e-1), err16

    print("KERNEL_OK")
</pallas_src>

<mosaic_0001>
module attributes {stable_mosaic.version = 11 : i64} {
  func.func @kernel(%arg0: i32, %arg1: memref<1x18x18x4xf32, #tpu.memory_space<vmem>>, %arg2: memref<36x8xf32, #tpu.memory_space<vmem>>, %arg3: memref<1x8x256xf32, #tpu.memory_space<vmem>>, %arg4: memref<1x2x8xf32, #tpu.memory_space<vmem>>) attributes {dimension_semantics = [#tpu.dimension_semantics<parallel>], iteration_bounds = array<i64: 2>, scalar_prefetch = 0 : i64, scratch_operands = 0 : i64, tpu.core_type = #tpu.core_type<tc>, window_params = [{transform_indices = @transform_0, window_bounds = array<i64: 1, 18, 18, 4>}, {pipeline_mode = #tpu.pipeline_mode<synchronous>, transform_indices = @transform_1, window_bounds = array<i64: 36, 8>}, {transform_indices = @transform_2, window_bounds = array<i64: 1, 8, 256>}, {transform_indices = @transform_3, window_bounds = array<i64: 1, 2, 8>}]} {
    %c0 = arith.constant 0 : index
    %c0_0 = arith.constant 0 : index
    %0 = vector.load %arg2[%c0, %c0_0] : memref<36x8xf32, #tpu.memory_space<vmem>>, vector<36x8xf32>
    %cst = arith.constant 0.000000e+00 : f32
    %1 = vector.broadcast %cst : f32 to vector<1x8xf32>
    %c0_i32 = arith.constant 0 : i32
    %c16_i32 = arith.constant 16 : i32
    %2 = arith.muli %c0_i32, %c16_i32 : i32
    %c0_1 = arith.constant 0 : index
    %3 = arith.index_cast %2 : i32 to index
    %c0_2 = arith.constant 0 : index
    %c0_3 = arith.constant 0 : index
    %4 = vector.load %arg1[%c0_1, %3, %c0_2, %c0_3] : memref<1x18x18x4xf32, #tpu.memory_space<vmem>>, vector<1x18x18x4xf32>
    %5 = vector.shape_cast %4 : vector<1x18x18x4xf32> to vector<18x18x4xf32>
    %6 = vector.extract_strided_slice %5 {offsets = [0, 0, 0], sizes = [16, 16, 4], strides = [1, 1, 1]} : vector<18x18x4xf32> to vector<16x16x4xf32>
    %7 = vector.extract_strided_slice %5 {offsets = [0, 1, 0], sizes = [16, 16, 4], strides = [1, 1, 1]} : vector<18x18x4xf32> to vector<16x16x4xf32>
    %8 = vector.extract_strided_slice %5 {offsets = [0, 2, 0], sizes = [16, 16, 4], strides = [1, 1, 1]} : vector<18x18x4xf32> to vector<16x16x4xf32>
    %9 = vector.extract_strided_slice %5 {offsets = [1, 0, 0], sizes = [16, 16, 4], strides = [1, 1, 1]} : vector<18x18x4xf32> to vector<16x16x4xf32>
    %10 = vector.extract_strided_slice %5 {offsets = [1, 1, 0], sizes = [16, 16, 4], strides = [1, 1, 1]} : vector<18x18x4xf32> to vector<16x16x4xf32>
    %11 = vector.extract_strided_slice %5 {offsets = [1, 2, 0], sizes = [16, 16, 4], strides = [1, 1, 1]} : vector<18x18x4xf32> to vector<16x16x4xf32>
    %12 = vector.extract_strided_slice %5 {offsets = [2, 0, 0], sizes = [16, 16, 4], strides = [1, 1, 1]} : vector<18x18x4xf32> to vector<16x16x4xf32>
    %13 = vector.extract_strided_slice %5 {offsets = [2, 1, 0], sizes = [16, 16, 4], strides = [1, 1, 1]} : vector<18x18x4xf32> to vector<16x16x4xf32>
    %14 = vector.extract_strided_slice %5 {offsets = [2, 2, 0], sizes = [16, 16, 4], strides = [1, 1, 1]} : vector<18x18x4xf32> to vector<16x16x4xf32>
    %15 = tpu.concatenate %6, %7, %8, %9, %10, %11, %12, %13, %14 in 2 : vector<16x16x4xf32>, vector<16x16x4xf32>, vector<16x16x4xf32>, vector<16x16x4xf32>, vector<16x16x4xf32>, vector<16x16x4xf32>, vector<16x16x4xf32>, vector<16x16x4xf32>, vector<16x16x4xf32> -> vector<16x16x36xf32>
    %16 = vector.shape_cast %15 : vector<16x16x36xf32> to vector<256x36xf32>
    %cst_4 = arith.constant dense<0.000000e+00> : vector<256x8xf32>
    %17 = tpu.matmul %16, %0, %cst_4 {dimension_numbers = #tpu.dot_dimension_numbers<[1], [0], [0], [1], [0, 0, 1, 1], [], []>} : vector<256x36xf32>, vector<36x8xf32>, vector<256x8xf32> -> vector<256x8xf32>
    %cst_5 = arith.constant dense<0.000000e+00> : vector<8xf32>
    %18 = vector.multi_reduction <add>, %17, %cst_5 [0] : vector<256x8xf32> to vector<8xf32>
    %19 = vector.shape_cast %18 : vector<8xf32> to vector<1x8xf32>
    %cst_6 = arith.constant 2.560000e+02 : f32
    %20 = vector.broadcast %cst_6 : f32 to vector<1x8xf32>
    %21 = arith.divf %19, %20 : vector<1x8xf32>
    %22 = vector.broadcast %21 : vector<1x8xf32> to vector<256x8xf32>
    %23 = arith.subf %17, %22 : vector<256x8xf32>
    %24 = arith.mulf %23, %23 : vector<256x8xf32>
    %cst_7 = arith.constant dense<0.000000e+00> : vector<8xf32>
    %25 = vector.multi_reduction <add>, %24, %cst_7 [0] : vector<256x8xf32> to vector<8xf32>
    %26 = vector.shape_cast %25 : vector<8xf32> to vector<1x8xf32>
    %c256_i32 = arith.constant 256 : i32
    %27 = arith.muli %c0_i32, %c256_i32 : i32
    %28 = arith.sitofp %27 : i32 to f32
    %cst_8 = arith.constant 2.560000e+02 : f32
    %29 = arith.addf %28, %cst_8 : f32
    %30 = arith.subf %21, %1 : vector<1x8xf32>
    %cst_9 = arith.constant 2.560000e+02 : f32
    %31 = arith.divf %cst_9, %29 : f32
    %32 = vector.broadcast %31 : f32 to vector<1x8xf32>
    %33 = arith.mulf %30, %32 : vector<1x8xf32>
    %34 = arith.addf %1, %33 : vector<1x8xf32>
    %35 = arith.addf %1, %26 : vector<1x8xf32>
    %36 = arith.mulf %30, %30 : vector<1x8xf32>
    %cst_10 = arith.constant 2.560000e+02 : f32
    %37 = arith.mulf %28, %cst_10 : f32
    %38 = arith.divf %37, %29 : f32
    %39 = vector.broadcast %38 : f32 to vector<1x8xf32>
    %40 = arith.mulf %36, %39 : vector<1x8xf32>
    %41 = arith.addf %35, %40 : vector<1x8xf32>
    %c256_i32_11 = arith.constant 256 : i32
    %42 = arith.muli %c0_i32, %c256_i32_11 : i32
    %43 = tpu.assume_multiple %42, 128 : i32
    %44 = tpu.transpose %17, [1, 0] : vector<256x8xf32> -> vector<8x256xf32>
    %c0_12 = arith.constant 0 : index
    %c0_13 = arith.constant 0 : index
    %45 = arith.index_cast %43 : i32 to index
    %46 = vector.load %arg3[%c0_12, %c0_13, %45] : memref<1x8x256xf32, #tpu.memory_space<vmem>>, vector<1x8x256xf32>
    %47 = vector.shape_cast %46 : vector<1x8x256xf32> to vector<8x256xf32>
    %48 = vector.shape_cast %44 : vector<8x256xf32> to vector<1x8x256xf32>
    tpu.vector_store %arg3[%c0_12, %c0_13, %45], %48 {strides = array<i32>} : memref<1x8x256xf32, #tpu.memory_space<vmem>>, vector<1x8x256xf32>,
    %c1_i32 = arith.constant 1 : i32
    %49 = tpu.concatenate %34, %41 in 0 : vector<1x8xf32>, vector<1x8xf32> -> vector<2x8xf32>
    %c0_14 = arith.constant 0 : index
    %c0_15 = arith.constant 0 : index
    %c0_16 = arith.constant 0 : index
    %50 = vector.load %arg4[%c0_14, %c0_15, %c0_16] : memref<1x2x8xf32, #tpu.memory_space<vmem>>, vector<1x2x8xf32>
    %51 = vector.shape_cast %50 : vector<1x2x8xf32> to vector<2x8xf32>
    %52 = vector.shape_cast %49 : vector<2x8xf32> to vector<1x2x8xf32>
    tpu.vector_store %arg4[%c0_14, %c0_15, %c0_16], %52 {strides = array<i32>} : memref<1x2x8xf32, #tpu.memory_space<vmem>>, vector<1x2x8xf32>,
    return
  }
  func.func @transform_0(%arg0: i32) -> (i32, i32, i32, i32) {
    %c0_i32 = arith.constant 0 : i32
    %c0_i32_0 = arith.constant 0 : i32
    %c0_i32_1 = arith.constant 0 : i32
    %c0_i32_2 = arith.constant 0 : i32
    return %arg0, %c0_i32, %c0_i32_0, %c0_i32_1 : i32, i32, i32, i32
  }
  func.func @transform_1(%arg0: i32) -> (i32, i32) {
    %c0_i32 = arith.constant 0 : i32
    %c0_i32_0 = arith.constant 0 : i32
    %c0_i32_1 = arith.constant 0 : i32
    return %c0_i32, %c0_i32_0 : i32, i32
  }
  func.func @transform_2(%arg0: i32) -> (i32, i32, i32) {
    %c0_i32 = arith.constant 0 : i32
    %c0_i32_0 = arith.constant 0 : i32
    %c0_i32_1 = arith.constant 0 : i32
    return %arg0, %c0_i32, %c0_i32_0 : i32, i32, i32
  }
  func.func @transform_3(%arg0: i32) -> (i32, i32, i32) {
    %c0_i32 = arith.constant 0 : i32
    %c0_i32_0 = arith.constant 0 : i32
    %c0_i32_1 = arith.constant 0 : i32
    return %arg0, %c0_i32, %c0_i32_0 : i32, i32, i32
  }
}

</mosaic_0001>

<llo_original>
// kernel: tpu_custom_call.1
$region0: #{tpu_custom_call.1}
  #allocation0 [shape = 'u32[]', space=smem, size = 0x4, offset = 0x4, fixed_abs, tag = 'smem constant byte address 0x4 - core index']
  #allocation1 [shape = 'u32[72,128]{1,0:T(1,128)}', space=vmem, size = 0x9000, scoped, tag = 'internal scratch']
  %s0 = inlined_call_operand.vmem [shape: f32[2,18,18,4], index: 0, kind: input, shape index: {}]
  %s1 = inlined_call_operand.vmem [shape: f32[36,8], index: 1, kind: input, shape index: {}]
  %s2 = inlined_call_operand.hbm [shape: f32[2,8,256], index: 2, kind: output, shape index: {0}]
  %s3 = inlined_call_operand.hbm [shape: f32[2,2,8], index: 3, kind: output, shape index: {1}]
  %4 = xla_tuple %s2, %s3
  %s5 = sld [smem:[#allocation0]]
  $region49: #{tpu_custom_call.1} parent=0
    _
  %s7 = ssub.s32 1, %s5
  %s8 = scalar_select 0, %s7, %s5
  $region1: #{tpu_custom_call.1} parent=0
    #allocation2 [shape = 'u8[16384]{0}', space=vmem, size = 0x4000, scoped, tag = 'output window, operand 0']
    #allocation3 [shape = 's32[2]{0}', space=sflag, size = 0x8, scoped, tag = 'scoped memory for tpu_custom_call.1']
    #allocation4 [shape = 'u8[2048]{0}', space=vmem, size = 0x800, scoped, tag = 'output window, operand 1']
    #allocation5 [shape = 's32[2]{0}', space=sflag, size = 0x8, scoped, tag = 'scoped memory for tpu_custom_call.1']
    %9 = vsyncpa [#allocation3], 0
    %s10 = scalar_lea.sflag [#allocation3], 1
    %11 = vsyncpa %s10, 0
    %12 = vsyncpa [#allocation5], 0
    %s13 = scalar_lea.sflag [#allocation5], 1
    %14 = vsyncpa %s13, 0
    loop: start=0, step=1, limit=4
    $region2: #{tpu_custom_call.1} parent=1 // loop_pre_header
      _
    $region3: #{tpu_custom_call.1} parent=1 // loop_header
      %s16 = sphi 0, %s20
      %p17 = scmp.ge.s32.totalorder %s16, 4
      %s26 = sphi 0, %s28
      %s29 = sphi 0, %s26
      %s30 = sphi 0, %s29
      %s46 = sphi 0, %s30
      %s50 = sphi 0, %s50
      %s52 = sphi 0, %s50
      %s53 = sphi 0, %s52
      %s67 = sphi 0, %s53
      %s73 = sphi 0, %s75
      %s76 = sphi 0, %s73
      %s77 = sphi 0, %s76
      %s93 = sphi 0, %s77
      %s99 = sphi 0, %s101
      %s102 = sphi 0, %s99
      %s103 = sphi 0, %s102
      %s119 = sphi 0, %s103
    $region4: #{tpu_custom_call.1} parent=1 // loop_header_branch
      %19 = sbr.rel (%p17) target = $region8
    $region5: #{tpu_custom_call.1} parent=1 // loop_body
      %s21 = ssub.s32 %s16, 1
      %s22 = ssub.s32 %s16, 2
      %s23 = sadd.s32 %s16, 1
      %s24 = ssub.s32 %s16, %s23
      %p25 = scmp.eq.s32.totalorder %s24, 0
      %s27 = sadd.s32 %s26, 1
      %s28 = scalar_select %p25, %s26, %s27
      %p31 = pneg %p25
      %p32 = scmp.eq.s32.totalorder %s16, 1
      %p33 = por %p31, %p32
      %p34 = scmp.ne.s32.totalorder %s26, %s29
      %p35 = scmp.eq.s32.totalorder %s16, 0
      %p36 = por %p34, %p35
      %p37 = scmp.ne.s32.totalorder %s26, %s29
      %p38 = scmp.eq.s32.totalorder %s21, 1
      %p39 = por %p37, %p38
      %p40 = scmp.ne.s32.totalorder %s29, %s30
      %p41 = scmp.eq.s32.totalorder %s21, 0
      %p42 = por %p40, %p41
      %p43 = scmp.ne.s32.totalorder %s29, %s30
      %p44 = scmp.eq.s32.totalorder %s22, 1
      %p45 = por %p43, %p44
      %p47 = scmp.ne.s32.totalorder %s30, %s46
      %p48 = scmp.eq.s32.totalorder %s22, 0
      %p49 = por %p47, %p48
      %s51 = sadd.s32 %s50, 1
      %p54 = scmp.eq.s32.totalorder %s16, 1
      %p55 = scmp.ne.s32.totalorder %s50, %s52
      %p56 = scmp.eq.s32.totalorder %s16, 0
      %p57 = por %p55, %p56
      %p58 = scmp.ne.s32.totalorder %s50, %s52
      %p59 = scmp.eq.s32.totalorder %s21, 1
      %p60 = por %p58, %p59
      %p61 = scmp.ne.s32.totalorder %s52, %s53
      %p62 = scmp.eq.s32.totalorder %s21, 0
      %p63 = por %p61, %p62
      %p64 = scmp.ne.s32.totalorder %s52, %s53
      %p65 = scmp.eq.s32.totalorder %s22, 1
      %p66 = por %p64, %p65
      %p68 = scmp.ne.s32.totalorder %s53, %s67
      %p69 = scmp.eq.s32.totalorder %s22, 0
      %p70 = por %p68, %p69
      %s71 = ssub.s32 %s16, %s23
      %p72 = scmp.eq.s32.totalorder %s71, 0
      %s74 = sadd.s32 %s73, 1
      %s75 = scalar_select %p72, %s73, %s74
      %p78 = pneg %p72
      %p79 = scmp.eq.s32.totalorder %s16, 1
      %p80 = por %p78, %p79
      %p81 = scmp.ne.s32.totalorder %s73, %s76
      %p82 = scmp.eq.s32.totalorder %s16, 0
      %p83 = por %p81, %p82
      %p84 = scmp.ne.s32.totalorder %s73, %s76
      %p85 = scmp.eq.s32.totalorder %s21, 1
      %p86 = por %p84, %p85
      %p87 = scmp.ne.s32.totalorder %s76, %s77
      %p88 = scmp.eq.s32.totalorder %s21, 0
      %p89 = por %p87, %p88
      %p90 = scmp.ne.s32.totalorder %s76, %s77
      %p91 = scmp.eq.s32.totalorder %s22, 1
      %p92 = por %p90, %p91
      %p94 = scmp.ne.s32.totalorder %s77, %s93
      %p95 = scmp.eq.s32.totalorder %s22, 0
      %p96 = por %p94, %p95
      %s97 = ssub.s32 %s16, %s23
      %p98 = scmp.eq.s32.totalorder %s97, 0
      %s100 = sadd.s32 %s99, 1
      %s101 = scalar_select %p98, %s99, %s100
      %p104 = pneg %p98
      %p105 = scmp.eq.s32.totalorder %s16, 1
      %p106 = por %p104, %p105
      %p107 = scmp.ne.s32.totalorder %s99, %s102
      %p108 = scmp.eq.s32.totalorder %s16, 0
      %p109 = por %p107, %p108
      %p110 = scmp.ne.s32.totalorder %s99, %s102
      %p111 = scmp.eq.s32.totalorder %s21, 1
      %p112 = por %p110, %p111
      %p113 = scmp.ne.s32.totalorder %s102, %s103
      %p114 = scmp.eq.s32.totalorder %s21, 0
      %p115 = por %p113, %p114
      %p116 = scmp.ne.s32.totalorder %s102, %s103
      %p117 = scmp.eq.s32.totalorder %s22, 1
      %p118 = por %p116, %p117
      %p120 = scmp.ne.s32.totalorder %s103, %s119
      %p121 = scmp.eq.s32.totalorder %s22, 0
      %p122 = por %p120, %p121
      %p123 = scmp.le.s32.totalorder 1, %s16
      %p124 = scmp.lt.s32.totalorder %s16, 3
      %p125 = pnand %p123, %p124
      %p126 = pneg %p125
      // Predicated region
      $region9: #{tpu_custom_call.1} parent=5 // pred_check
        _
      $region10: #{tpu_custom_call.1} parent=5 // pred_check_branch
        %128 = sbr.rel (%p125) target = $region12
      $region11: #{tpu_custom_call.1} parent=5 // pred_region
        %s129 = ssub.s32 %s16, 1
        // Predicated region
        $region13: #{tpu_custom_call.1} parent=11 // pred_check
          %p130 = pneg %p63
        $region14: #{tpu_custom_call.1} parent=11 // pred_check_branch
          %132 = sbr.rel (%p130) target = $region16
        $region15: #{tpu_custom_call.1} parent=11 // pred_region
          _
        $region16: #{tpu_custom_call.1} parent=11 // pred_fallthru
          _
      $region12: #{tpu_custom_call.1} parent=5 // pred_fallthru
        _
      %p133 = scmp.lt.s32.totalorder %s16, 2
      // Predicated region
      $region17: #{tpu_custom_call.1} parent=5 // pred_check
        %p134 = pneg %p133
      $region18: #{tpu_custom_call.1} parent=5 // pred_check_branch
        %136 = sbr.rel (%p134) target = $region20
      $region19: #{tpu_custom_call.1} parent=5 // pred_region
        // Predicated region
        $region21: #{tpu_custom_call.1} parent=19 // pred_check
          %p137 = pneg %p36
        $region22: #{tpu_custom_call.1} parent=19 // pred_check_branch
          %139 = sbr.rel (%p137) target = $region24
        $region23: #{tpu_custom_call.1} parent=19 // pred_region
          %p140 = scmp.lt.s32.totalorder %s16, 1
          %s141 = scalar_select %p140, %s16, 1
          %s142 = smul.addr %s141, 54
          %s143 = smul.addr %s142, 8
          %s144 = scalar_lea.vmem %s0, %s143
        $region24: #{tpu_custom_call.1} parent=19 // pred_fallthru
          _
      $region20: #{tpu_custom_call.1} parent=5 // pred_fallthru
        _
      %p145 = scmp.le.s32.totalorder 1, %s16
      %p146 = scmp.lt.s32.totalorder %s16, 3
      %p147 = pnand %p145, %p146
      %p148 = pneg %p147
      // Predicated region
      $region25: #{tpu_custom_call.1} parent=5 // pred_check
        _
      $region26: #{tpu_custom_call.1} parent=5 // pred_check_branch
        %150 = sbr.rel (%p147) target = $region28
      $region27: #{tpu_custom_call.1} parent=5 // pred_region
        %s151 = ssub.s32 %s16, 1
        %p152 = scmp.lt.s32.totalorder %s21, 1
        %s153 = scalar_select %p152, %s21, 1
        %s154 = smul.addr %s153, 54
        %s155 = smul.addr %s154, 8
        %s156 = scalar_lea.vmem %s0, %s155
        %p157 = pneg %p42
        %p158 = pneg %p39
        %p159 = pneg %p63
        %p160 = pneg %p60
        %p161 = pneg %p89
        %p162 = pneg %p86
        %s163 = sand.u32 %s76, 1
        %s164 = scalar_lea.sflag [#allocation3], %s163
        %s165 = sand.u32 %s76, 1
        %s166 = smul.addr %s165, 16
        %s167 = scalar_lea.vmem [#allocation2], %s166
        %p168 = pneg %p115
        %p169 = pneg %p112
        %s170 = sand.u32 %s102, 1
        %s171 = scalar_lea.sflag [#allocation5], %s170
        %s172 = sand.u32 %s102, 1
        %s173 = smul.addr %s172, 2
        %s174 = scalar_lea.vmem [#allocation4], %s173
        %p175 = scmp.lt.s32.totalorder %s21, 1
        %s176 = scalar_select %p175, %s21, 1
        %s177 = smul.addr %s176, 54
        %s178 = smul.addr %s177, 8
        %s179 = scalar_lea.vmem %s0, %s178
        %v180 = vld [vmem:[%s1] sm:$0xff]
        %v181 = vld [vmem:[%s1 + $0x8] sm:$0xff]
        %v182 = vld [vmem:[%s1 + $0x10] sm:$0xff]
        %v183 = vld [vmem:[%s1 + $0x18] sm:$0xff]
        %v184 = vld [vmem:[%s1 + $0x20] sm:$0xf]
        %v185 = vld [vmem:[%s179] sm:$0xff]
        %v186 = vld [vmem:[%s179 + $0x8] sm:$0xff]
        %v187 = vld [vmem:[%s179 + $0x10] sm:$0x3]
        %v188 = vld [vmem:[%s179 + $0x18] sm:$0xff]
        %v189 = vld [vmem:[%s179 + $0x20] sm:$0xff]
        %v190 = vld [vmem:[%s179 + $0x28] sm:$0x3]
        %v191 = vld [vmem:[%s179 + $0x30] sm:$0xff]
        %v192 = vld [vmem:[%s179 + $0x38] sm:$0xff]
        %v193 = vld [vmem:[%s179 + $0x40] sm:$0x3]
        %v194 = vld [vmem:[%s179 + $0x48] sm:$0xff]
        %v195 = vld [vmem:[%s179 + $0x50] sm:$0xff]
        %v196 = vld [vmem:[%s179 + $0x58] sm:$0x3]
        %v197 = vld [vmem:[%s179 + $0x60] sm:$0xff]
        %v198 = vld [vmem:[%s179 + $0x68] sm:$0xff]
        %v199 = vld [vmem:[%s179 + $0x70] sm:$0x3]
        %v200 = vld [vmem:[%s179 + $0x78] sm:$0xff]
        %v201 = vld [vmem:[%s179 + $0x80] sm:$0xff]
        %v202 = vld [vmem:[%s179 + $0x88] sm:$0x3]
        %v203 = vld [vmem:[%s179 + $0x90] sm:$0xff]
        %v204 = vld [vmem:[%s179 + $0x98] sm:$0xff]
        %v205 = vld [vmem:[%s179 + $0xa0] sm:$0x3]
        %v206 = vld [vmem:[%s179 + $0xa8] sm:$0xff]
        %v207 = vld [vmem:[%s179 + $0xb0] sm:$0xff]
        %v208 = vld [vmem:[%s179 + $0xb8] sm:$0x3]
        %v209 = vld [vmem:[%s179 + $0xc0] sm:$0xff]
        %v210 = vld [vmem:[%s179 + $0xc8] sm:$0xff]
        %v211 = vld [vmem:[%s179 + $0xd0] sm:$0x3]
        %v212 = vld [vmem:[%s179 + $0xd8] sm:$0xff]
        %v213 = vld [vmem:[%s179 + $0xe0] sm:$0xff]
        %v214 = vld [vmem:[%s179 + $0xe8] sm:$0x3]
        %v215 = vld [vmem:[%s179 + $0xf0] sm:$0xff]
        %v216 = vld [vmem:[%s179 + $0xf8] sm:$0xff]
        %v217 = vld [vmem:[%s179 + $0x100] sm:$0x3]
        %v218 = vld [vmem:[%s179 + $0x108] sm:$0xff]
        %v219 = vld [vmem:[%s179 + $0x110] sm:$0xff]
        %v220 = vld [vmem:[%s179 + $0x118] sm:$0x3]
        %v221 = vld [vmem:[%s179 + $0x120] sm:$0xff]
        %v222 = vld [vmem:[%s179 + $0x128] sm:$0xff]
        %v223 = vld [vmem:[%s179 + $0x130] sm:$0x3]
        %v224 = vld [vmem:[%s179 + $0x138] sm:$0xff]
        %v225 = vld [vmem:[%s179 + $0x140] sm:$0xff]
        %v226 = vld [vmem:[%s179 + $0x148] sm:$0x3]
        %v227 = vld [vmem:[%s179 + $0x150] sm:$0xff]
        %v228 = vld [vmem:[%s179 + $0x158] sm:$0xff]
        %v229 = vld [vmem:[%s179 + $0x160] sm:$0x3]
        %v230 = vld [vmem:[%s179 + $0x168] sm:$0xff]
        %v231 = vld [vmem:[%s179 + $0x170] sm:$0xff]
        %v232 = vld [vmem:[%s179 + $0x178] sm:$0x3]
        %v233 = vld [vmem:[%s179 + $0x180] sm:$0xff]
        %v234 = vld [vmem:[%s179 + $0x188] sm:$0xff]
        %v235 = vld [vmem:[%s179 + $0x190] sm:$0x3]
        %v236 = vld [vmem:[%s179 + $0x198] sm:$0xff]
        %v237 = vld [vmem:[%s179 + $0x1a0] sm:$0xff]
        %v238 = vld [vmem:[%s179 + $0x1a8] sm:$0x3]
        %vm287 = vcmask 1046528
        %v288 = vrot.slane %v185, 1
        %v289 = vrot.slane %v186, 1
        %v290 = vsel %vm287, %v288, %v289
        %v291 = vrot.slane %v187, 1
        %v292 = vsel %vm287, %v289, %v291
        %v293 = vrot.slane %v188, 1
        %v294 = vrot.slane %v189, 1
        %v295 = vsel %vm287, %v293, %v294
        %v296 = vrot.slane %v190, 1
        %v297 = vsel %vm287, %v294, %v296
        %v298 = vrot.slane %v191, 1
        %v299 = vrot.slane %v192, 1
        %v300 = vsel %vm287, %v298, %v299
        %v301 = vrot.slane %v193, 1
        %v302 = vsel %vm287, %v299, %v301
        %v303 = vrot.slane %v194, 1
        %v304 = vrot.slane %v195, 1
        %v305 = vsel %vm287, %v303, %v304
        %v306 = vrot.slane %v196, 1
        %v307 = vsel %vm287, %v304, %v306
        %v308 = vrot.slane %v197, 1
        %v309 = vrot.slane %v198, 1
        %v310 = vsel %vm287, %v308, %v309
        %v311 = vrot.slane %v199, 1
        %v312 = vsel %vm287, %v309, %v311
        %v313 = vrot.slane %v200, 1
        %v314 = vrot.slane %v201, 1
        %v315 = vsel %vm287, %v313, %v314
        %v316 = vrot.slane %v202, 1
        %v317 = vsel %vm287, %v314, %v316
        %v318 = vrot.slane %v203, 1
        %v319 = vrot.slane %v204, 1
        %v320 = vsel %vm287, %v318, %v319
        %v321 = vrot.slane %v205, 1
        %v322 = vsel %vm287, %v319, %v321
        %v323 = vrot.slane %v206, 1
        %v324 = vrot.slane %v207, 1
        %v325 = vsel %vm287, %v323, %v324
        %v326 = vrot.slane %v208, 1
        %v327 = vsel %vm287, %v324, %v326
        %v328 = vrot.slane %v209, 1
        %v329 = vrot.slane %v210, 1
        %v330 = vsel %vm287, %v328, %v329
        %v331 = vrot.slane %v211, 1
        %v332 = vsel %vm287, %v329, %v331
        %v333 = vrot.slane %v212, 1
        %v334 = vrot.slane %v213, 1
        %v335 = vsel %vm287, %v333, %v334
        %v336 = vrot.slane %v214, 1
        %v337 = vsel %vm287, %v334, %v336
        %v338 = vrot.slane %v215, 1
        %v339 = vrot.slane %v216, 1
        %v340 = vsel %vm287, %v338, %v339
        %v341 = vrot.slane %v217, 1
        %v342 = vsel %vm287, %v339, %v341
        %v343 = vrot.slane %v218, 1
        %v344 = vrot.slane %v219, 1
        %v345 = vsel %vm287, %v343, %v344
        %v346 = vrot.slane %v220, 1
        %v347 = vsel %vm287, %v344, %v346
        %v348 = vrot.slane %v221, 1
        %v349 = vrot.slane %v222, 1
        %v350 = vsel %vm287, %v348, %v349
        %v351 = vrot.slane %v223, 1
        %v352 = vsel %vm287, %v349, %v351
        %v353 = vrot.slane %v224, 1
        %v354 = vrot.slane %v225, 1
        %v355 = vsel %vm287, %v353, %v354
        %v356 = vrot.slane %v226, 1
        %v357 = vsel %vm287, %v354, %v356
        %v358 = vrot.slane %v227, 1
        %v359 = vrot.slane %v228, 1
        %v360 = vsel %vm287, %v358, %v359
        %v361 = vrot.slane %v229, 1
        %v362 = vsel %vm287, %v359, %v361
        %v363 = vrot.slane %v230, 1
        %v364 = vrot.slane %v231, 1
        %v365 = vsel %vm287, %v363, %v364
        %v366 = vrot.slane %v232, 1
        %v367 = vsel %vm287, %v364, %v366
        %368 = vrot.lane.b32.xlu0 %v290, 4
        %v369 = vpop.permute.xlu0 %368
        %370 = vrot.lane.b32.xlu0 %v292, 4
        %v371 = vpop.permute.xlu0 %370
        %372 = vrot.lane.b32.xlu0 %v295, 4
        %v373 = vpop.permute.xlu0 %372
        %374 = vrot.lane.b32.xlu0 %v297, 4
        %v375 = vpop.permute.xlu0 %374
        %376 = vrot.lane.b32.xlu0 %v300, 4
        %v377 = vpop.permute.xlu0 %376
        %378 = vrot.lane.b32.xlu0 %v302, 4
        %v379 = vpop.permute.xlu0 %378
        %380 = vrot.lane.b32.xlu0 %v305, 4
        %v381 = vpop.permute.xlu0 %380
        %382 = vrot.lane.b32.xlu0 %v307, 4
        %v383 = vpop.permute.xlu0 %382
        %384 = vrot.lane.b32.xlu0 %v310, 4
        %v385 = vpop.permute.xlu0 %384
        %386 = vrot.lane.b32.xlu0 %v312, 4
        %v387 = vpop.permute.xlu0 %386
        %388 = vrot.lane.b32.xlu0 %v315, 4
        %v389 = vpop.permute.xlu0 %388
        %390 = vrot.lane.b32.xlu0 %v317, 4
        %v391 = vpop.permute.xlu0 %390
        %392 = vrot.lane.b32.xlu0 %v320, 4
        %v393 = vpop.permute.xlu0 %392
        %394 = vrot.lane.b32.xlu0 %v322, 4
        %v395 = vpop.permute.xlu0 %394
        %396 = vrot.lane.b32.xlu0 %v325, 4
        %v397 = vpop.permute.xlu0 %396
        %398 = vrot.lane.b32.xlu0 %v327, 4
        %v399 = vpop.permute.xlu0 %398
        %400 = vrot.lane.b32.xlu0 %v330, 4
        %v401 = vpop.permute.xlu0 %400
        %402 = vrot.lane.b32.xlu0 %v332, 4
        %v403 = vpop.permute.xlu0 %402
        %404 = vrot.lane.b32.xlu0 %v335, 4
        %v405 = vpop.permute.xlu0 %404
        %406 = vrot.lane.b32.xlu0 %v337, 4
        %v407 = vpop.permute.xlu0 %406
        %408 = vrot.lane.b32.xlu0 %v340, 4
        %v409 = vpop.permute.xlu0 %408
        %410 = vrot.lane.b32.xlu0 %v342, 4
        %v411 = vpop.permute.xlu0 %410
        %412 = vrot.lane.b32.xlu0 %v345, 4
        %v413 = vpop.permute.xlu0 %412
        %414 = vrot.lane.b32.xlu0 %v347, 4
        %v415 = vpop.permute.xlu0 %414
        %416 = vrot.lane.b32.xlu0 %v350, 4
        %v417 = vpop.permute.xlu0 %416
        %418 = vrot.lane.b32.xlu0 %v352, 4
        %v419 = vpop.permute.xlu0 %418
        %420 = vrot.lane.b32.xlu0 %v355, 4
        %v421 = vpop.permute.xlu0 %420
        %422 = vrot.lane.b32.xlu0 %v357, 4
        %v423 = vpop.permute.xlu0 %422
        %424 = vrot.lane.b32.xlu0 %v360, 4
        %v425 = vpop.permute.xlu0 %424
        %426 = vrot.lane.b32.xlu0 %v362, 4
        %v427 = vpop.permute.xlu0 %426
        %428 = vrot.lane.b32.xlu0 %v365, 4
        %v429 = vpop.permute.xlu0 %428
        %430 = vrot.lane.b32.xlu0 %v367, 4
        %v431 = vpop.permute.xlu0 %430
        %vm464 = vcmask 1045504
        %v465 = vrot.slane %v185, 2
        %v466 = vrot.slane %v186, 2
        %v467 = vsel %vm464, %v465, %v466
        %v468 = vrot.slane %v187, 2
        %v469 = vsel %vm464, %v466, %v468
        %v470 = vrot.slane %v188, 2
        %v471 = vrot.slane %v189, 2
        %v472 = vsel %vm464, %v470, %v471
        %v473 = vrot.slane %v190, 2
        %v474 = vsel %vm464, %v471, %v473
        %v475 = vrot.slane %v191, 2
        %v476 = vrot.slane %v192, 2
        %v477 = vsel %vm464, %v475, %v476
        %v478 = vrot.slane %v193, 2
        %v479 = vsel %vm464, %v476, %v478
        %v480 = vrot.slane %v194, 2
        %v481 = vrot.slane %v195, 2
        %v482 = vsel %vm464, %v480, %v481
        %v483 = vrot.slane %v196, 2
        %v484 = vsel %vm464, %v481, %v483
        %v485 = vrot.slane %v197, 2
        %v486 = vrot.slane %v198, 2
        %v487 = vsel %vm464, %v485, %v486
        %v488 = vrot.slane %v199, 2
        %v489 = vsel %vm464, %v486, %v488
        %v490 = vrot.slane %v200, 2
        %v491 = vrot.slane %v201, 2
        %v492 = vsel %vm464, %v490, %v491
        %v493 = vrot.slane %v202, 2
        %v494 = vsel %vm464, %v491, %v493
        %v495 = vrot.slane %v203, 2
        %v496 = vrot.slane %v204, 2
        %v497 = vsel %vm464, %v495, %v496
        %v498 = vrot.slane %v205, 2
        %v499 = vsel %vm464, %v496, %v498
        %v500 = vrot.slane %v206, 2
        %v501 = vrot.slane %v207, 2
        %v502 = vsel %vm464, %v500, %v501
        %v503 = vrot.slane %v208, 2
        %v504 = vsel %vm464, %v501, %v503
        %v505 = vrot.slane %v209, 2
        %v506 = vrot.slane %v210, 2
        %v507 = vsel %vm464, %v505, %v506
        %v508 = vrot.slane %v211, 2
        %v509 = vsel %vm464, %v506, %v508
        %v510 = vrot.slane %v212, 2
        %v511 = vrot.slane %v213, 2
        %v512 = vsel %vm464, %v510, %v511
        %v513 = vrot.slane %v214, 2
        %v514 = vsel %vm464, %v511, %v513
        %v515 = vrot.slane %v215, 2
        %v516 = vrot.slane %v216, 2
        %v517 = vsel %vm464, %v515, %v516
        %v518 = vrot.slane %v217, 2
        %v519 = vsel %vm464, %v516, %v518
        %v520 = vrot.slane %v218, 2
        %v521 = vrot.slane %v219, 2
        %v522 = vsel %vm464, %v520, %v521
        %v523 = vrot.slane %v220, 2
        %v524 = vsel %vm464, %v521, %v523
        %v525 = vrot.slane %v221, 2
        %v526 = vrot.slane %v222, 2
        %v527 = vsel %vm464, %v525, %v526
        %v528 = vrot.slane %v223, 2
        %v529 = vsel %vm464, %v526, %v528
        %v530 = vrot.slane %v224, 2
        %v531 = vrot.slane %v225, 2
        %v532 = vsel %vm464, %v530, %v531
        %v533 = vrot.slane %v226, 2
        %v534 = vsel %vm464, %v531, %v533
        %v535 = vrot.slane %v227, 2
        %v536 = vrot.slane %v228, 2
        %v537 = vsel %vm464, %v535, %v536
        %v538 = vrot.slane %v229, 2
        %v539 = vsel %vm464, %v536, %v538
        %v540 = vrot.slane %v230, 2
        %v541 = vrot.slane %v231, 2
        %v542 = vsel %vm464, %v540, %v541
        %v543 = vrot.slane %v232, 2
        %v544 = vsel %vm464, %v541, %v543
        %545 = vrot.lane.b32.xlu0 %v467, 8
        %v546 = vpop.permute.xlu0 %545
        %547 = vrot.lane.b32.xlu0 %v469, 8
        %v548 = vpop.permute.xlu0 %547
        %549 = vrot.lane.b32.xlu0 %v472, 8
        %v550 = vpop.permute.xlu0 %549
        %551 = vrot.lane.b32.xlu0 %v474, 8
        %v552 = vpop.permute.xlu0 %551
        %553 = vrot.lane.b32.xlu0 %v477, 8
        %v554 = vpop.permute.xlu0 %553
        %555 = vrot.lane.b32.xlu0 %v479, 8
        %v556 = vpop.permute.xlu0 %555
        %557 = vrot.lane.b32.xlu0 %v482, 8
        %v558 = vpop.permute.xlu0 %557
        %559 = vrot.lane.b32.xlu0 %v484, 8
        %v560 = vpop.permute.xlu0 %559
        %561 = vrot.lane.b32.xlu0 %v487, 8
        %v562 = vpop.permute.xlu0 %561
        %563 = vrot.lane.b32.xlu0 %v489, 8
        %v564 = vpop.permute.xlu0 %563
        %565 = vrot.lane.b32.xlu0 %v492, 8
        %v566 = vpop.permute.xlu0 %565
        %567 = vrot.lane.b32.xlu0 %v494, 8
        %v568 = vpop.permute.xlu0 %567
        %569 = vrot.lane.b32.xlu0 %v497, 8
        %v570 = vpop.permute.xlu0 %569
        %571 = vrot.lane.b32.xlu0 %v499, 8
        %v572 = vpop.permute.xlu0 %571
        %573 = vrot.lane.b32.xlu0 %v502, 8
        %v574 = vpop.permute.xlu0 %573
        %575 = vrot.lane.b32.xlu0 %v504, 8
        %v576 = vpop.permute.xlu0 %575
        %577 = vrot.lane.b32.xlu0 %v507, 8
        %v578 = vpop.permute.xlu0 %577
        %579 = vrot.lane.b32.xlu0 %v509, 8
        %v580 = vpop.permute.xlu0 %579
        %581 = vrot.lane.b32.xlu0 %v512, 8
        %v582 = vpop.permute.xlu0 %581
        %583 = vrot.lane.b32.xlu0 %v514, 8
        %v584 = vpop.permute.xlu0 %583
        %585 = vrot.lane.b32.xlu0 %v517, 8
        %v586 = vpop.permute.xlu0 %585
        %587 = vrot.lane.b32.xlu0 %v519, 8
        %v588 = vpop.permute.xlu0 %587
        %589 = vrot.lane.b32.xlu0 %v522, 8
        %v590 = vpop.permute.xlu0 %589
        %591 = vrot.lane.b32.xlu0 %v524, 8
        %v592 = vpop.permute.xlu0 %591
        %593 = vrot.lane.b32.xlu0 %v527, 8
        %v594 = vpop.permute.xlu0 %593
        %595 = vrot.lane.b32.xlu0 %v529, 8
        %v596 = vpop.permute.xlu0 %595
        %597 = vrot.lane.b32.xlu0 %v532, 8
        %v598 = vpop.permute.xlu0 %597
        %599 = vrot.lane.b32.xlu0 %v534, 8
        %v600 = vpop.permute.xlu0 %599
        %601 = vrot.lane.b32.xlu0 %v537, 8
        %v602 = vpop.permute.xlu0 %601
        %603 = vrot.lane.b32.xlu0 %v539, 8
        %v604 = vpop.permute.xlu0 %603
        %605 = vrot.lane.b32.xlu0 %v542, 8
        %v606 = vpop.permute.xlu0 %605
        %607 = vrot.lane.b32.xlu0 %v544, 8
        %v608 = vpop.permute.xlu0 %607
        %643 = vrot.lane.b32.xlu0 %v188, 12
        %v644 = vpop.permute.xlu0 %643
        %645 = vrot.lane.b32.xlu0 %v189, 12
        %v646 = vpop.permute.xlu0 %645
        %647 = vrot.lane.b32.xlu0 %v191, 12
        %v648 = vpop.permute.xlu0 %647
        %649 = vrot.lane.b32.xlu0 %v192, 12
        %v650 = vpop.permute.xlu0 %649
        %651 = vrot.lane.b32.xlu0 %v194, 12
        %v652 = vpop.permute.xlu0 %651
        %653 = vrot.lane.b32.xlu0 %v195, 12
        %v654 = vpop.permute.xlu0 %653
        %655 = vrot.lane.b32.xlu0 %v197, 12
        %v656 = vpop.permute.xlu0 %655
        %657 = vrot.lane.b32.xlu0 %v198, 12
        %v658 = vpop.permute.xlu0 %657
        %659 = vrot.lane.b32.xlu0 %v200, 12
        %v660 = vpop.permute.xlu0 %659
        %661 = vrot.lane.b32.xlu0 %v201, 12
        %v662 = vpop.permute.xlu0 %661
        %663 = vrot.lane.b32.xlu0 %v203, 12
        %v664 = vpop.permute.xlu0 %663
        %665 = vrot.lane.b32.xlu0 %v204, 12
        %v666 = vpop.permute.xlu0 %665
        %667 = vrot.lane.b32.xlu0 %v206, 12
        %v668 = vpop.permute.xlu0 %667
        %669 = vrot.lane.b32.xlu0 %v207, 12
        %v670 = vpop.permute.xlu0 %669
        %671 = vrot.lane.b32.xlu0 %v209, 12
        %v672 = vpop.permute.xlu0 %671
        %673 = vrot.lane.b32.xlu0 %v210, 12
        %v674 = vpop.permute.xlu0 %673
        %675 = vrot.lane.b32.xlu0 %v212, 12
        %v676 = vpop.permute.xlu0 %675
        %677 = vrot.lane.b32.xlu0 %v213, 12
        %v678 = vpop.permute.xlu0 %677
        %679 = vrot.lane.b32.xlu0 %v215, 12
        %v680 = vpop.permute.xlu0 %679
        %681 = vrot.lane.b32.xlu0 %v216, 12
        %v682 = vpop.permute.xlu0 %681
        %683 = vrot.lane.b32.xlu0 %v218, 12
        %v684 = vpop.permute.xlu0 %683
        %685 = vrot.lane.b32.xlu0 %v219, 12
        %v686 = vpop.permute.xlu0 %685
        %687 = vrot.lane.b32.xlu0 %v221, 12
        %v688 = vpop.permute.xlu0 %687
        %689 = vrot.lane.b32.xlu0 %v222, 12
        %v690 = vpop.permute.xlu0 %689
        %691 = vrot.lane.b32.xlu0 %v224, 12
        %v692 = vpop.permute.xlu0 %691
        %693 = vrot.lane.b32.xlu0 %v225, 12
        %v694 = vpop.permute.xlu0 %693
        %695 = vrot.lane.b32.xlu0 %v227, 12
        %v696 = vpop.permute.xlu0 %695
        %697 = vrot.lane.b32.xlu0 %v228, 12
        %v698 = vpop.permute.xlu0 %697
        %699 = vrot.lane.b32.xlu0 %v230, 12
        %v700 = vpop.permute.xlu0 %699
        %701 = vrot.lane.b32.xlu0 %v231, 12
        %v702 = vpop.permute.xlu0 %701
        %703 = vrot.lane.b32.xlu0 %v233, 12
        %v704 = vpop.permute.xlu0 %703
        %705 = vrot.lane.b32.xlu0 %v234, 12
        %v706 = vpop.permute.xlu0 %705
        %v740 = vrot.slane %v233, 1
        %v741 = vrot.slane %v234, 1
        %v742 = vsel %vm287, %v740, %v741
        %v743 = vrot.slane %v235, 1
        %v744 = vsel %vm287, %v741, %v743
        %745 = vrot.lane.b32.xlu0 %v295, 16
        %v746 = vpop.permute.xlu0 %745
        %747 = vrot.lane.b32.xlu0 %v297, 16
        %v748 = vpop.permute.xlu0 %747
        %749 = vrot.lane.b32.xlu0 %v300, 16
        %v750 = vpop.permute.xlu0 %749
        %751 = vrot.lane.b32.xlu0 %v302, 16
        %v752 = vpop.permute.xlu0 %751
        %753 = vrot.lane.b32.xlu0 %v305, 16
        %v754 = vpop.permute.xlu0 %753
        %755 = vrot.lane.b32.xlu0 %v307, 16
        %v756 = vpop.permute.xlu0 %755
        %757 = vrot.lane.b32.xlu0 %v310, 16
        %v758 = vpop.permute.xlu0 %757
        %759 = vrot.lane.b32.xlu0 %v312, 16
        %v760 = vpop.permute.xlu0 %759
        %761 = vrot.lane.b32.xlu0 %v315, 16
        %v762 = vpop.permute.xlu0 %761
        %763 = vrot.lane.b32.xlu0 %v317, 16
        %v764 = vpop.permute.xlu0 %763
        %765 = vrot.lane.b32.xlu0 %v320, 16
        %v766 = vpop.permute.xlu0 %765
        %767 = vrot.lane.b32.xlu0 %v322, 16
        %v768 = vpop.permute.xlu0 %767
        %769 = vrot.lane.b32.xlu0 %v325, 16
        %v770 = vpop.permute.xlu0 %769
        %771 = vrot.lane.b32.xlu0 %v327, 16
        %v772 = vpop.permute.xlu0 %771
        %773 = vrot.lane.b32.xlu0 %v330, 16
        %v774 = vpop.permute.xlu0 %773
        %775 = vrot.lane.b32.xlu0 %v332, 16
        %v776 = vpop.permute.xlu0 %775
        %777 = vrot.lane.b32.xlu0 %v335, 16
        %v778 = vpop.permute.xlu0 %777
        %779 = vrot.lane.b32.xlu0 %v337, 16
        %v780 = vpop.permute.xlu0 %779
        %781 = vrot.lane.b32.xlu0 %v340, 16
        %v782 = vpop.permute.xlu0 %781
        %783 = vrot.lane.b32.xlu0 %v342, 16
        %v784 = vpop.permute.xlu0 %783
        %785 = vrot.lane.b32.xlu0 %v345, 16
        %v786 = vpop.permute.xlu0 %785
        %787 = vrot.lane.b32.xlu0 %v347, 16
        %v788 = vpop.permute.xlu0 %787
        %789 = vrot.lane.b32.xlu0 %v350, 16
        %v790 = vpop.permute.xlu0 %789
        %791 = vrot.lane.b32.xlu0 %v352, 16
        %v792 = vpop.permute.xlu0 %791
        %793 = vrot.lane.b32.xlu0 %v355, 16
        %v794 = vpop.permute.xlu0 %793
        %795 = vrot.lane.b32.xlu0 %v357, 16
        %v796 = vpop.permute.xlu0 %795
        %797 = vrot.lane.b32.xlu0 %v360, 16
        %v798 = vpop.permute.xlu0 %797
        %799 = vrot.lane.b32.xlu0 %v362, 16
        %v800 = vpop.permute.xlu0 %799
        %801 = vrot.lane.b32.xlu0 %v365, 16
        %v802 = vpop.permute.xlu0 %801
        %803 = vrot.lane.b32.xlu0 %v367, 16
        %v804 = vpop.permute.xlu0 %803
        %805 = vrot.lane.b32.xlu0 %v742, 16
        %v806 = vpop.permute.xlu0 %805
        %807 = vrot.lane.b32.xlu0 %v744, 16
        %v808 = vpop.permute.xlu0 %807
        %v841 = vrot.slane %v233, 2
        %v842 = vrot.slane %v234, 2
        %v843 = vsel %vm464, %v841, %v842
        %v844 = vrot.slane %v235, 2
        %v845 = vsel %vm464, %v842, %v844
        %846 = vrot.lane.b32.xlu0 %v472, 20
        %v847 = vpop.permute.xlu0 %846
        %848 = vrot.lane.b32.xlu0 %v474, 20
        %v849 = vpop.permute.xlu0 %848
        %850 = vrot.lane.b32.xlu0 %v477, 20
        %v851 = vpop.permute.xlu0 %850
        %852 = vrot.lane.b32.xlu0 %v479, 20
        %v853 = vpop.permute.xlu0 %852
        %854 = vrot.lane.b32.xlu0 %v482, 20
        %v855 = vpop.permute.xlu0 %854
        %856 = vrot.lane.b32.xlu0 %v484, 20
        %v857 = vpop.permute.xlu0 %856
        %858 = vrot.lane.b32.xlu0 %v487, 20
        %v859 = vpop.permute.xlu0 %858
        %860 = vrot.lane.b32.xlu0 %v489, 20
        %v861 = vpop.permute.xlu0 %860
        %862 = vrot.lane.b32.xlu0 %v492, 20
        %v863 = vpop.permute.xlu0 %862
        %864 = vrot.lane.b32.xlu0 %v494, 20
        %v865 = vpop.permute.xlu0 %864
        %866 = vrot.lane.b32.xlu0 %v497, 20
        %v867 = vpop.permute.xlu0 %866
        %868 = vrot.lane.b32.xlu0 %v499, 20
        %v869 = vpop.permute.xlu0 %868
        %870 = vrot.lane.b32.xlu0 %v502, 20
        %v871 = vpop.permute.xlu0 %870
        %872 = vrot.lane.b32.xlu0 %v504, 20
        %v873 = vpop.permute.xlu0 %872
        %874 = vrot.lane.b32.xlu0 %v507, 20
        %v875 = vpop.permute.xlu0 %874
        %876 = vrot.lane.b32.xlu0 %v509, 20
        %v877 = vpop.permute.xlu0 %876
        %878 = vrot.lane.b32.xlu0 %v512, 20
        %v879 = vpop.permute.xlu0 %878
        %880 = vrot.lane.b32.xlu0 %v514, 20
        %v881 = vpop.permute.xlu0 %880
        %882 = vrot.lane.b32.xlu0 %v517, 20
        %v883 = vpop.permute.xlu0 %882
        %884 = vrot.lane.b32.xlu0 %v519, 20
        %v885 = vpop.permute.xlu0 %884
        %886 = vrot.lane.b32.xlu0 %v522, 20
        %v887 = vpop.permute.xlu0 %886
        %888 = vrot.lane.b32.xlu0 %v524, 20
        %v889 = vpop.permute.xlu0 %888
        %890 = vrot.lane.b32.xlu0 %v527, 20
        %v891 = vpop.permute.xlu0 %890
        %892 = vrot.lane.b32.xlu0 %v529, 20
        %v893 = vpop.permute.xlu0 %892
        %894 = vrot.lane.b32.xlu0 %v532, 20
        %v895 = vpop.permute.xlu0 %894
        %896 = vrot.lane.b32.xlu0 %v534, 20
        %v897 = vpop.permute.xlu0 %896
        %898 = vrot.lane.b32.xlu0 %v537, 20
        %v899 = vpop.permute.xlu0 %898
        %900 = vrot.lane.b32.xlu0 %v539, 20
        %v901 = vpop.permute.xlu0 %900
        %902 = vrot.lane.b32.xlu0 %v542, 20
        %v903 = vpop.permute.xlu0 %902
        %904 = vrot.lane.b32.xlu0 %v544, 20
        %v905 = vpop.permute.xlu0 %904
        %906 = vrot.lane.b32.xlu0 %v843, 20
        %v907 = vpop.permute.xlu0 %906
        %908 = vrot.lane.b32.xlu0 %v845, 20
        %v909 = vpop.permute.xlu0 %908
        %944 = vrot.lane.b32.xlu0 %v191, 24
        %v945 = vpop.permute.xlu0 %944
        %946 = vrot.lane.b32.xlu0 %v192, 24
        %v947 = vpop.permute.xlu0 %946
        %948 = vrot.lane.b32.xlu0 %v194, 24
        %v949 = vpop.permute.xlu0 %948
        %950 = vrot.lane.b32.xlu0 %v195, 24
        %v951 = vpop.permute.xlu0 %950
        %952 = vrot.lane.b32.xlu0 %v197, 24
        %v953 = vpop.permute.xlu0 %952
        %954 = vrot.lane.b32.xlu0 %v198, 24
        %v955 = vpop.permute.xlu0 %954
        %956 = vrot.lane.b32.xlu0 %v200, 24
        %v957 = vpop.permute.xlu0 %956
        %958 = vrot.lane.b32.xlu0 %v201, 24
        %v959 = vpop.permute.xlu0 %958
        %960 = vrot.lane.b32.xlu0 %v203, 24
        %v961 = vpop.permute.xlu0 %960
        %962 = vrot.lane.b32.xlu0 %v204, 24
        %v963 = vpop.permute.xlu0 %962
        %964 = vrot.lane.b32.xlu0 %v206, 24
        %v965 = vpop.permute.xlu0 %964
        %966 = vrot.lane.b32.xlu0 %v207, 24
        %v967 = vpop.permute.xlu0 %966
        %968 = vrot.lane.b32.xlu0 %v209, 24
        %v969 = vpop.permute.xlu0 %968
        %970 = vrot.lane.b32.xlu0 %v210, 24
        %v971 = vpop.permute.xlu0 %970
        %972 = vrot.lane.b32.xlu0 %v212, 24
        %v973 = vpop.permute.xlu0 %972
        %974 = vrot.lane.b32.xlu0 %v213, 24
        %v975 = vpop.permute.xlu0 %974
        %976 = vrot.lane.b32.xlu0 %v215, 24
        %v977 = vpop.permute.xlu0 %976
        %978 = vrot.lane.b32.xlu0 %v216, 24
        %v979 = vpop.permute.xlu0 %978
        %980 = vrot.lane.b32.xlu0 %v218, 24
        %v981 = vpop.permute.xlu0 %980
        %982 = vrot.lane.b32.xlu0 %v219, 24
        %v983 = vpop.permute.xlu0 %982
        %984 = vrot.lane.b32.xlu0 %v221, 24
        %v985 = vpop.permute.xlu0 %984
        %986 = vrot.lane.b32.xlu0 %v222, 24
        %v987 = vpop.permute.xlu0 %986
        %988 = vrot.lane.b32.xlu0 %v224, 24
        %v989 = vpop.permute.xlu0 %988
        %990 = vrot.lane.b32.xlu0 %v225, 24
        %v991 = vpop.permute.xlu0 %990
        %992 = vrot.lane.b32.xlu0 %v227, 24
        %v993 = vpop.permute.xlu0 %992
        %994 = vrot.lane.b32.xlu0 %v228, 24
        %v995 = vpop.permute.xlu0 %994
        %996 = vrot.lane.b32.xlu0 %v230, 24
        %v997 = vpop.permute.xlu0 %996
        %998 = vrot.lane.b32.xlu0 %v231, 24
        %v999 = vpop.permute.xlu0 %998
        %1000 = vrot.lane.b32.xlu0 %v233, 24
        %v1001 = vpop.permute.xlu0 %1000
        %1002 = vrot.lane.b32.xlu0 %v234, 24
        %v1003 = vpop.permute.xlu0 %1002
        %1004 = vrot.lane.b32.xlu0 %v236, 24
        %v1005 = vpop.permute.xlu0 %1004
        %1006 = vrot.lane.b32.xlu0 %v237, 24
        %v1007 = vpop.permute.xlu0 %1006
        %v1041 = vrot.slane %v236, 1
        %v1042 = vrot.slane %v237, 1
        %v1043 = vsel %vm287, %v1041, %v1042
        %v1044 = vrot.slane %v238, 1
        %v1045 = vsel %vm287, %v1042, %v1044
        %1046 = vrot.lane.b32.xlu0 %v300, 28
        %v1047 = vpop.permute.xlu0 %1046
        %1048 = vrot.lane.b32.xlu0 %v302, 28
        %v1049 = vpop.permute.xlu0 %1048
        %1050 = vrot.lane.b32.xlu0 %v305, 28
        %v1051 = vpop.permute.xlu0 %1050
        %1052 = vrot.lane.b32.xlu0 %v307, 28
        %v1053 = vpop.permute.xlu0 %1052
        %1054 = vrot.lane.b32.xlu0 %v310, 28
        %v1055 = vpop.permute.xlu0 %1054
        %1056 = vrot.lane.b32.xlu0 %v312, 28
        %v1057 = vpop.permute.xlu0 %1056
        %1058 = vrot.lane.b32.xlu0 %v315, 28
        %v1059 = vpop.permute.xlu0 %1058
        %1060 = vrot.lane.b32.xlu0 %v317, 28
        %v1061 = vpop.permute.xlu0 %1060
        %1062 = vrot.lane.b32.xlu0 %v320, 28
        %v1063 = vpop.permute.xlu0 %1062
        %1064 = vrot.lane.b32.xlu0 %v322, 28
        %v1065 = vpop.permute.xlu0 %1064
        %1066 = vrot.lane.b32.xlu0 %v325, 28
        %v1067 = vpop.permute.xlu0 %1066
        %1068 = vrot.lane.b32.xlu0 %v327, 28
        %v1069 = vpop.permute.xlu0 %1068
        %1070 = vrot.lane.b32.xlu0 %v330, 28
        %v1071 = vpop.permute.xlu0 %1070
        %1072 = vrot.lane.b32.xlu0 %v332, 28
        %v1073 = vpop.permute.xlu0 %1072
        %1074 = vrot.lane.b32.xlu0 %v335, 28
        %v1075 = vpop.permute.xlu0 %1074
        %1076 = vrot.lane.b32.xlu0 %v337, 28
        %v1077 = vpop.permute.xlu0 %1076
        %1078 = vrot.lane.b32.xlu0 %v340, 28
        %v1079 = vpop.permute.xlu0 %1078
        %1080 = vrot.lane.b32.xlu0 %v342, 28
        %v1081 = vpop.permute.xlu0 %1080
        %1082 = vrot.lane.b32.xlu0 %v345, 28
        %v1083 = vpop.permute.xlu0 %1082
        %1084 = vrot.lane.b32.xlu0 %v347, 28
        %v1085 = vpop.permute.xlu0 %1084
        %1086 = vrot.lane.b32.xlu0 %v350, 28
        %v1087 = vpop.permute.xlu0 %1086
        %1088 = vrot.lane.b32.xlu0 %v352, 28
        %v1089 = vpop.permute.xlu0 %1088
        %1090 = vrot.lane.b32.xlu0 %v355, 28
        %v1091 = vpop.permute.xlu0 %1090
        %1092 = vrot.lane.b32.xlu0 %v357, 28
        %v1093 = vpop.permute.xlu0 %1092
        %1094 = vrot.lane.b32.xlu0 %v360, 28
        %v1095 = vpop.permute.xlu0 %1094
        %1096 = vrot.lane.b32.xlu0 %v362, 28
        %v1097 = vpop.permute.xlu0 %1096
        %1098 = vrot.lane.b32.xlu0 %v365, 28
        %v1099 = vpop.permute.xlu0 %1098
        %1100 = vrot.lane.b32.xlu0 %v367, 28
        %v1101 = vpop.permute.xlu0 %1100
        %1102 = vrot.lane.b32.xlu0 %v742, 28
        %v1103 = vpop.permute.xlu0 %1102
        %1104 = vrot.lane.b32.xlu0 %v744, 28
        %v1105 = vpop.permute.xlu0 %1104
        %1106 = vrot.lane.b32.xlu0 %v1043, 28
        %v1107 = vpop.permute.xlu0 %1106
        %1108 = vrot.lane.b32.xlu0 %v1045, 28
        %v1109 = vpop.permute.xlu0 %1108
        %v1142 = vrot.slane %v236, 2
        %v1143 = vrot.slane %v237, 2
        %v1144 = vsel %vm464, %v1142, %v1143
        %v1145 = vrot.slane %v238, 2
        %v1146 = vsel %vm464, %v1143, %v1145
        %1147 = vrot.lane.b32.xlu0 %v477, 32
        %v1148 = vpop.permute.xlu0 %1147
        %1149 = vrot.lane.b32.xlu0 %v479, 32
        %v1150 = vpop.permute.xlu0 %1149
        %1151 = vrot.lane.b32.xlu0 %v482, 32
        %v1152 = vpop.permute.xlu0 %1151
        %1153 = vrot.lane.b32.xlu0 %v484, 32
        %v1154 = vpop.permute.xlu0 %1153
        %1155 = vrot.lane.b32.xlu0 %v487, 32
        %v1156 = vpop.permute.xlu0 %1155
        %1157 = vrot.lane.b32.xlu0 %v489, 32
        %v1158 = vpop.permute.xlu0 %1157
        %1159 = vrot.lane.b32.xlu0 %v492, 32
        %v1160 = vpop.permute.xlu0 %1159
        %1161 = vrot.lane.b32.xlu0 %v494, 32
        %v1162 = vpop.permute.xlu0 %1161
        %1163 = vrot.lane.b32.xlu0 %v497, 32
        %v1164 = vpop.permute.xlu0 %1163
        %1165 = vrot.lane.b32.xlu0 %v499, 32
        %v1166 = vpop.permute.xlu0 %1165
        %1167 = vrot.lane.b32.xlu0 %v502, 32
        %v1168 = vpop.permute.xlu0 %1167
        %1169 = vrot.lane.b32.xlu0 %v504, 32
        %v1170 = vpop.permute.xlu0 %1169
        %1171 = vrot.lane.b32.xlu0 %v507, 32
        %v1172 = vpop.permute.xlu0 %1171
        %1173 = vrot.lane.b32.xlu0 %v509, 32
        %v1174 = vpop.permute.xlu0 %1173
        %1175 = vrot.lane.b32.xlu0 %v512, 32
        %v1176 = vpop.permute.xlu0 %1175
        %1177 = vrot.lane.b32.xlu0 %v514, 32
        %v1178 = vpop.permute.xlu0 %1177
        %1179 = vrot.lane.b32.xlu0 %v517, 32
        %v1180 = vpop.permute.xlu0 %1179
        %1181 = vrot.lane.b32.xlu0 %v519, 32
        %v1182 = vpop.permute.xlu0 %1181
        %1183 = vrot.lane.b32.xlu0 %v522, 32
        %v1184 = vpop.permute.xlu0 %1183
        %1185 = vrot.lane.b32.xlu0 %v524, 32
        %v1186 = vpop.permute.xlu0 %1185
        %1187 = vrot.lane.b32.xlu0 %v527, 32
        %v1188 = vpop.permute.xlu0 %1187
        %1189 = vrot.lane.b32.xlu0 %v529, 32
        %v1190 = vpop.permute.xlu0 %1189
        %1191 = vrot.lane.b32.xlu0 %v532, 32
        %v1192 = vpop.permute.xlu0 %1191
        %1193 = vrot.lane.b32.xlu0 %v534, 32
        %v1194 = vpop.permute.xlu0 %1193
        %1195 = vrot.lane.b32.xlu0 %v537, 32
        %v1196 = vpop.permute.xlu0 %1195
        %1197 = vrot.lane.b32.xlu0 %v539, 32
        %v1198 = vpop.permute.xlu0 %1197
        %1199 = vrot.lane.b32.xlu0 %v542, 32
        %v1200 = vpop.permute.xlu0 %1199
        %1201 = vrot.lane.b32.xlu0 %v544, 32
        %v1202 = vpop.permute.xlu0 %1201
        %1203 = vrot.lane.b32.xlu0 %v843, 32
        %v1204 = vpop.permute.xlu0 %1203
        %1205 = vrot.lane.b32.xlu0 %v845, 32
        %v1206 = vpop.permute.xlu0 %1205
        %1207 = vrot.lane.b32.xlu0 %v1144, 32
        %v1208 = vpop.permute.xlu0 %1207
        %1209 = vrot.lane.b32.xlu0 %v1146, 32
        %v1210 = vpop.permute.xlu0 %1209
        %vm1243 = vcmask 31744
        %v1244 = vsel %vm1243, %v185, %v369
        %v1245 = vsel %vm1243, %v186, %v371
        %v1246 = vsel %vm1243, %v188, %v373
        %v1247 = vsel %vm1243, %v189, %v375
        %v1248 = vsel %vm1243, %v191, %v377
        %v1249 = vsel %vm1243, %v192, %v379
        %v1250 = vsel %vm1243, %v194, %v381
        %v1251 = vsel %vm1243, %v195, %v383
        %v1252 = vsel %vm1243, %v197, %v385
        %v1253 = vsel %vm1243, %v198, %v387
        %v1254 = vsel %vm1243, %v200, %v389
        %v1255 = vsel %vm1243, %v201, %v391
        %v1256 = vsel %vm1243, %v203, %v393
        %v1257 = vsel %vm1243, %v204, %v395
        %v1258 = vsel %vm1243, %v206, %v397
        %v1259 = vsel %vm1243, %v207, %v399
        %v1260 = vsel %vm1243, %v209, %v401
        %v1261 = vsel %vm1243, %v210, %v403
        %v1262 = vsel %vm1243, %v212, %v405
        %v1263 = vsel %vm1243, %v213, %v407
        %v1264 = vsel %vm1243, %v215, %v409
        %v1265 = vsel %vm1243, %v216, %v411
        %v1266 = vsel %vm1243, %v218, %v413
        %v1267 = vsel %vm1243, %v219, %v415
        %v1268 = vsel %vm1243, %v221, %v417
        %v1269 = vsel %vm1243, %v222, %v419
        %v1270 = vsel %vm1243, %v224, %v421
        %v1271 = vsel %vm1243, %v225, %v423
        %v1272 = vsel %vm1243, %v227, %v425
        %v1273 = vsel %vm1243, %v228, %v427
        %v1274 = vsel %vm1243, %v230, %v429
        %v1275 = vsel %vm1243, %v231, %v431
        %vm1276 = vcmask 64512
        %v1277 = vsel %vm1276, %v1244, %v546
        %v1278 = vsel %vm1276, %v1245, %v548
        %v1279 = vsel %vm1276, %v1246, %v550
        %v1280 = vsel %vm1276, %v1247, %v552
        %v1281 = vsel %vm1276, %v1248, %v554
        %v1282 = vsel %vm1276, %v1249, %v556
        %v1283 = vsel %vm1276, %v1250, %v558
        %v1284 = vsel %vm1276, %v1251, %v560
        %v1285 = vsel %vm1276, %v1252, %v562
        %v1286 = vsel %vm1276, %v1253, %v564
        %v1287 = vsel %vm1276, %v1254, %v566
        %v1288 = vsel %vm1276, %v1255, %v568
        %v1289 = vsel %vm1276, %v1256, %v570
        %v1290 = vsel %vm1276, %v1257, %v572
        %v1291 = vsel %vm1276, %v1258, %v574
        %v1292 = vsel %vm1276, %v1259, %v576
        %v1293 = vsel %vm1276, %v1260, %v578
        %v1294 = vsel %vm1276, %v1261, %v580
        %v1295 = vsel %vm1276, %v1262, %v582
        %v1296 = vsel %vm1276, %v1263, %v584
        %v1297 = vsel %vm1276, %v1264, %v586
        %v1298 = vsel %vm1276, %v1265, %v588
        %v1299 = vsel %vm1276, %v1266, %v590
        %v1300 = vsel %vm1276, %v1267, %v592
        %v1301 = vsel %vm1276, %v1268, %v594
        %v1302 = vsel %vm1276, %v1269, %v596
        %v1303 = vsel %vm1276, %v1270, %v598
        %v1304 = vsel %vm1276, %v1271, %v600
        %v1305 = vsel %vm1276, %v1272, %v602
        %v1306 = vsel %vm1276, %v1273, %v604
        %v1307 = vsel %vm1276, %v1274, %v606
        %v1308 = vsel %vm1276, %v1275, %v608
        %vm1309 = vcmask 97280
        %v1310 = vsel %vm1309, %v1277, %v644
        %v1311 = vsel %vm1309, %v1278, %v646
        %v1312 = vsel %vm1309, %v1279, %v648
        %v1313 = vsel %vm1309, %v1280, %v650
        %v1314 = vsel %vm1309, %v1281, %v652
        %v1315 = vsel %vm1309, %v1282, %v654
        %v1316 = vsel %vm1309, %v1283, %v656
        %v1317 = vsel %vm1309, %v1284, %v658
        %v1318 = vsel %vm1309, %v1285, %v660
        %v1319 = vsel %vm1309, %v1286, %v662
        %v1320 = vsel %vm1309, %v1287, %v664
        %v1321 = vsel %vm1309, %v1288, %v666
        %v1322 = vsel %vm1309, %v1289, %v668
        %v1323 = vsel %vm1309, %v1290, %v670
        %v1324 = vsel %vm1309, %v1291, %v672
        %v1325 = vsel %vm1309, %v1292, %v674
        %v1326 = vsel %vm1309, %v1293, %v676
        %v1327 = vsel %vm1309, %v1294, %v678
        %v1328 = vsel %vm1309, %v1295, %v680
        %v1329 = vsel %vm1309, %v1296, %v682
        %v1330 = vsel %vm1309, %v1297, %v684
        %v1331 = vsel %vm1309, %v1298, %v686
        %v1332 = vsel %vm1309, %v1299, %v688
        %v1333 = vsel %vm1309, %v1300, %v690
        %v1334 = vsel %vm1309, %v1301, %v692
        %v1335 = vsel %vm1309, %v1302, %v694
        %v1336 = vsel %vm1309, %v1303, %v696
        %v1337 = vsel %vm1309, %v1304, %v698
        %v1338 = vsel %vm1309, %v1305, %v700
        %v1339 = vsel %vm1309, %v1306, %v702
        %v1340 = vsel %vm1309, %v1307, %v704
        %v1341 = vsel %vm1309, %v1308, %v706
        %vm1342 = vcmask 130048
        %v1343 = vsel %vm1342, %v1310, %v746
        %v1344 = vsel %vm1342, %v1311, %v748
        %v1345 = vsel %vm1342, %v1312, %v750
        %v1346 = vsel %vm1342, %v1313, %v752
        %v1347 = vsel %vm1342, %v1314, %v754
        %v1348 = vsel %vm1342, %v1315, %v756
        %v1349 = vsel %vm1342, %v1316, %v758
        %v1350 = vsel %vm1342, %v1317, %v760
        %v1351 = vsel %vm1342, %v1318, %v762
        %v1352 = vsel %vm1342, %v1319, %v764
        %v1353 = vsel %vm1342, %v1320, %v766
        %v1354 = vsel %vm1342, %v1321, %v768
        %v1355 = vsel %vm1342, %v1322, %v770
        %v1356 = vsel %vm1342, %v1323, %v772
        %v1357 = vsel %vm1342, %v1324, %v774
        %v1358 = vsel %vm1342, %v1325, %v776
        %v1359 = vsel %vm1342, %v1326, %v778
        %v1360 = vsel %vm1342, %v1327, %v780
        %v1361 = vsel %vm1342, %v1328, %v782
        %v1362 = vsel %vm1342, %v1329, %v784
        %v1363 = vsel %vm1342, %v1330, %v786
        %v1364 = vsel %vm1342, %v1331, %v788
        %v1365 = vsel %vm1342, %v1332, %v790
        %v1366 = vsel %vm1342, %v1333, %v792
        %v1367 = vsel %vm1342, %v1334, %v794
        %v1368 = vsel %vm1342, %v1335, %v796
        %v1369 = vsel %vm1342, %v1336, %v798
        %v1370 = vsel %vm1342, %v1337, %v800
        %v1371 = vsel %vm1342, %v1338, %v802
        %v1372 = vsel %vm1342, %v1339, %v804
        %v1373 = vsel %vm1342, %v1340, %v806
        %v1374 = vsel %vm1342, %v1341, %v808
        %vm1375 = vcmask 162816
        %v1376 = vsel %vm1375, %v1343, %v847
        %v1377 = vsel %vm1375, %v1344, %v849
        %v1378 = vsel %vm1375, %v1345, %v851
        %v1379 = vsel %vm1375, %v1346, %v853
        %v1380 = vsel %vm1375, %v1347, %v855
        %v1381 = vsel %vm1375, %v1348, %v857
        %v1382 = vsel %vm1375, %v1349, %v859
        %v1383 = vsel %vm1375, %v1350, %v861
        %v1384 = vsel %vm1375, %v1351, %v863
        %v1385 = vsel %vm1375, %v1352, %v865
        %v1386 = vsel %vm1375, %v1353, %v867
        %v1387 = vsel %vm1375, %v1354, %v869
        %v1388 = vsel %vm1375, %v1355, %v871
        %v1389 = vsel %vm1375, %v1356, %v873
        %v1390 = vsel %vm1375, %v1357, %v875
        %v1391 = vsel %vm1375, %v1358, %v877
        %v1392 = vsel %vm1375, %v1359, %v879
        %v1393 = vsel %vm1375, %v1360, %v881
        %v1394 = vsel %vm1375, %v1361, %v883
        %v1395 = vsel %vm1375, %v1362, %v885
        %v1396 = vsel %vm1375, %v1363, %v887
        %v1397 = vsel %vm1375, %v1364, %v889
        %v1398 = vsel %vm1375, %v1365, %v891
        %v1399 = vsel %vm1375, %v1366, %v893
        %v1400 = vsel %vm1375, %v1367, %v895
        %v1401 = vsel %vm1375, %v1368, %v897
        %v1402 = vsel %vm1375, %v1369, %v899
        %v1403 = vsel %vm1375, %v1370, %v901
        %v1404 = vsel %vm1375, %v1371, %v903
        %v1405 = vsel %vm1375, %v1372, %v905
        %v1406 = vsel %vm1375, %v1373, %v907
        %v1407 = vsel %vm1375, %v1374, %v909
        %vm1408 = vcmask 195584
        %v1409 = vsel %vm1408, %v1376, %v945
        %v1410 = vsel %vm1408, %v1377, %v947
        %v1411 = vsel %vm1408, %v1378, %v949
        %v1412 = vsel %vm1408, %v1379, %v951
        %v1413 = vsel %vm1408, %v1380, %v953
        %v1414 = vsel %vm1408, %v1381, %v955
        %v1415 = vsel %vm1408, %v1382, %v957
        %v1416 = vsel %vm1408, %v1383, %v959
        %v1417 = vsel %vm1408, %v1384, %v961
        %v1418 = vsel %vm1408, %v1385, %v963
        %v1419 = vsel %vm1408, %v1386, %v965
        %v1420 = vsel %vm1408, %v1387, %v967
        %v1421 = vsel %vm1408, %v1388, %v969
        %v1422 = vsel %vm1408, %v1389, %v971
        %v1423 = vsel %vm1408, %v1390, %v973
        %v1424 = vsel %vm1408, %v1391, %v975
        %v1425 = vsel %vm1408, %v1392, %v977
        %v1426 = vsel %vm1408, %v1393, %v979
        %v1427 = vsel %vm1408, %v1394, %v981
        %v1428 = vsel %vm1408, %v1395, %v983
        %v1429 = vsel %vm1408, %v1396, %v985
        %v1430 = vsel %vm1408, %v1397, %v987
        %v1431 = vsel %vm1408, %v1398, %v989
        %v1432 = vsel %vm1408, %v1399, %v991
        %v1433 = vsel %vm1408, %v1400, %v993
        %v1434 = vsel %vm1408, %v1401, %v995
        %v1435 = vsel %vm1408, %v1402, %v997
        %v1436 = vsel %vm1408, %v1403, %v999
        %v1437 = vsel %vm1408, %v1404, %v1001
        %v1438 = vsel %vm1408, %v1405, %v1003
        %v1439 = vsel %vm1408, %v1406, %v1005
        %v1440 = vsel %vm1408, %v1407, %v1007
        %vm1441 = vcmask 228352
        %v1442 = vsel %vm1441, %v1409, %v1047
        %v1443 = vsel %vm1441, %v1410, %v1049
        %v1444 = vsel %vm1441, %v1411, %v1051
        %v1445 = vsel %vm1441, %v1412, %v1053
        %v1446 = vsel %vm1441, %v1413, %v1055
        %v1447 = vsel %vm1441, %v1414, %v1057
        %v1448 = vsel %vm1441, %v1415, %v1059
        %v1449 = vsel %vm1441, %v1416, %v1061
        %v1450 = vsel %vm1441, %v1417, %v1063
        %v1451 = vsel %vm1441, %v1418, %v1065
        %v1452 = vsel %vm1441, %v1419, %v1067
        %v1453 = vsel %vm1441, %v1420, %v1069
        %v1454 = vsel %vm1441, %v1421, %v1071
        %v1455 = vsel %vm1441, %v1422, %v1073
        %v1456 = vsel %vm1441, %v1423, %v1075
        %v1457 = vsel %vm1441, %v1424, %v1077
        %v1458 = vsel %vm1441, %v1425, %v1079
        %v1459 = vsel %vm1441, %v1426, %v1081
        %v1460 = vsel %vm1441, %v1427, %v1083
        %v1461 = vsel %vm1441, %v1428, %v1085
        %v1462 = vsel %vm1441, %v1429, %v1087
        %v1463 = vsel %vm1441, %v1430, %v1089
        %v1464 = vsel %vm1441, %v1431, %v1091
        %v1465 = vsel %vm1441, %v1432, %v1093
        %v1466 = vsel %vm1441, %v1433, %v1095
        %v1467 = vsel %vm1441, %v1434, %v1097
        %v1468 = vsel %vm1441, %v1435, %v1099
        %v1469 = vsel %vm1441, %v1436, %v1101
        %v1470 = vsel %vm1441, %v1437, %v1103
        %v1471 = vsel %vm1441, %v1438, %v1105
        %v1472 = vsel %vm1441, %v1439, %v1107
        %v1473 = vsel %vm1441, %v1440, %v1109
        %vm1474 = vcmask 261120
        %v1475 = vsel %vm1474, %v1442, %v1148
        %v1476 = vsel %vm1474, %v1443, %v1150
        %v1477 = vsel %vm1474, %v1444, %v1152
        %v1478 = vsel %vm1474, %v1445, %v1154
        %v1479 = vsel %vm1474, %v1446, %v1156
        %v1480 = vsel %vm1474, %v1447, %v1158
        %v1481 = vsel %vm1474, %v1448, %v1160
        %v1482 = vsel %vm1474, %v1449, %v1162
        %v1483 = vsel %vm1474, %v1450, %v1164
        %v1484 = vsel %vm1474, %v1451, %v1166
        %v1485 = vsel %vm1474, %v1452, %v1168
        %v1486 = vsel %vm1474, %v1453, %v1170
        %v1487 = vsel %vm1474, %v1454, %v1172
        %v1488 = vsel %vm1474, %v1455, %v1174
        %v1489 = vsel %vm1474, %v1456, %v1176
        %v1490 = vsel %vm1474, %v1457, %v1178
        %v1491 = vsel %vm1474, %v1458, %v1180
        %v1492 = vsel %vm1474, %v1459, %v1182
        %v1493 = vsel %vm1474, %v1460, %v1184
        %v1494 = vsel %vm1474, %v1461, %v1186
        %v1495 = vsel %vm1474, %v1462, %v1188
        %v1496 = vsel %vm1474, %v1463, %v1190
        %v1497 = vsel %vm1474, %v1464, %v1192
        %v1498 = vsel %vm1474, %v1465, %v1194
        %v1499 = vsel %vm1474, %v1466, %v1196
        %v1500 = vsel %vm1474, %v1467, %v1198
        %v1501 = vsel %vm1474, %v1468, %v1200
        %v1502 = vsel %vm1474, %v1469, %v1202
        %v1503 = vsel %vm1474, %v1470, %v1204
        %v1504 = vsel %vm1474, %v1471, %v1206
        %v1505 = vsel %vm1474, %v1472, %v1208
        %v1506 = vsel %vm1474, %v1473, %v1210
        %vm1507 = vcmask 293888
        %v1509 = vsel %vm1507, %v1475, 0
        %v1512 = vsel %vm1507, %v1476, 0
        %v1515 = vsel %vm1507, %v1477, 0
        %v1518 = vsel %vm1507, %v1478, 0
        %v1521 = vsel %vm1507, %v1479, 0
        %v1524 = vsel %vm1507, %v1480, 0
        %v1527 = vsel %vm1507, %v1481, 0
        %v1530 = vsel %vm1507, %v1482, 0
        %v1533 = vsel %vm1507, %v1483, 0
        %v1536 = vsel %vm1507, %v1484, 0
        %v1539 = vsel %vm1507, %v1485, 0
        %v1542 = vsel %vm1507, %v1486, 0
        %v1545 = vsel %vm1507, %v1487, 0
        %v1548 = vsel %vm1507, %v1488, 0
        %v1551 = vsel %vm1507, %v1489, 0
        %v1554 = vsel %vm1507, %v1490, 0
        %v1557 = vsel %vm1507, %v1491, 0
        %v1560 = vsel %vm1507, %v1492, 0
        %v1563 = vsel %vm1507, %v1493, 0
        %v1566 = vsel %vm1507, %v1494, 0
        %v1569 = vsel %vm1507, %v1495, 0
        %v1572 = vsel %vm1507, %v1496, 0
        %v1575 = vsel %vm1507, %v1497, 0
        %v1578 = vsel %vm1507, %v1498, 0
        %v1581 = vsel %vm1507, %v1499, 0
        %v1584 = vsel %vm1507, %v1500, 0
        %v1587 = vsel %vm1507, %v1501, 0
        %v1590 = vsel %vm1507, %v1502, 0
        %v1593 = vsel %vm1507, %v1503, 0
        %v1596 = vsel %vm1507, %v1504, 0
        %v1599 = vsel %vm1507, %v1505, 0
        %v1602 = vsel %vm1507, %v1506, 0
        %vm1604 = vcmask 1043456
        %v1606 = vsel %vm1604, %v184, 0
        %1608 = vmatpush.msra.mxu0 0.0
        %1609 = vmatpush.msra.mxu0 0.0
        %1610 = vmatpush.msra.mxu0 0.0
        %1611 = vmatpush.msra.mxu0 0.0
        %1612 = vmatpush.msra.mxu0 0.0
        %1613 = vmatpush.msra.mxu0 0.0
        %1614 = vmatpush.msra.mxu0 0.0
        %1615 = vmatpush.msra.mxu0 0.0
        %1616 = vmatpush.msra.mxu0 0.0
        %1617 = vmatpush.msra.mxu0 0.0
        %1618 = vmatpush.msra.mxu0 0.0
        %1619 = vmatpush.msra.mxu0 %v1606
        %1620 = vmatpush.msra.mxu0 %v183
        %1621 = vmatpush.msra.mxu0 %v182
        %1622 = vmatpush.msra.mxu0 %v181
        %1623 = vmatpush.msra.mxu0 %v180
        %1624 = vmatmul.f32.gmra.mxu0 %v1509
        %v1625 = vpop.f32.mrf.mxu0
        %v1626 = vadd.f32 0.0, %v1625
        %1627 = vmatmul.f32.gmra.mxu0 %v1512
        %v1628 = vpop.f32.mrf.mxu0
        %v1629 = vadd.f32 0.0, %v1628
        %1630 = vmatmul.f32.gmra.mxu0 %v1515
        %v1631 = vpop.f32.mrf.mxu0
        %v1632 = vadd.f32 0.0, %v1631
        %1633 = vmatmul.f32.gmra.mxu0 %v1518
        %v1634 = vpop.f32.mrf.mxu0
        %v1635 = vadd.f32 0.0, %v1634
        %1636 = vmatmul.f32.gmra.mxu0 %v1521
        %v1637 = vpop.f32.mrf.mxu0
        %v1638 = vadd.f32 0.0, %v1637
        %1639 = vmatmul.f32.gmra.mxu0 %v1524
        %v1640 = vpop.f32.mrf.mxu0
        %v1641 = vadd.f32 0.0, %v1640
        %1642 = vmatmul.f32.gmra.mxu0 %v1527
        %v1643 = vpop.f32.mrf.mxu0
        %v1644 = vadd.f32 0.0, %v1643
        %1645 = vmatmul.f32.gmra.mxu0 %v1530
        %v1646 = vpop.f32.mrf.mxu0
        %v1647 = vadd.f32 0.0, %v1646
        %1648 = vmatmul.f32.gmra.mxu0 %v1533
        %v1649 = vpop.f32.mrf.mxu0
        %v1650 = vadd.f32 0.0, %v1649
        %1651 = vmatmul.f32.gmra.mxu0 %v1536
        %v1652 = vpop.f32.mrf.mxu0
        %v1653 = vadd.f32 0.0, %v1652
        %1654 = vmatmul.f32.gmra.mxu0 %v1539
        %v1655 = vpop.f32.mrf.mxu0
        %v1656 = vadd.f32 0.0, %v1655
        %1657 = vmatmul.f32.gmra.mxu0 %v1542
        %v1658 = vpop.f32.mrf.mxu0
        %v1659 = vadd.f32 0.0, %v1658
        %1660 = vmatmul.f32.gmra.mxu0 %v1545
        %v1661 = vpop.f32.mrf.mxu0
        %v1662 = vadd.f32 0.0, %v1661
        %1663 = vmatmul.f32.gmra.mxu0 %v1548
        %v1664 = vpop.f32.mrf.mxu0
        %v1665 = vadd.f32 0.0, %v1664
        %1666 = vmatmul.f32.gmra.mxu0 %v1551
        %v1667 = vpop.f32.mrf.mxu0
        %v1668 = vadd.f32 0.0, %v1667
        %1669 = vmatmul.f32.gmra.mxu0 %v1554
        %v1670 = vpop.f32.mrf.mxu0
        %v1671 = vadd.f32 0.0, %v1670
        %1672 = vmatmul.f32.gmra.mxu0 %v1557
        %v1673 = vpop.f32.mrf.mxu0
        %v1674 = vadd.f32 0.0, %v1673
        %1675 = vmatmul.f32.gmra.mxu0 %v1560
        %v1676 = vpop.f32.mrf.mxu0
        %v1677 = vadd.f32 0.0, %v1676
        %1678 = vmatmul.f32.gmra.mxu0 %v1563
        %v1679 = vpop.f32.mrf.mxu0
        %v1680 = vadd.f32 0.0, %v1679
        %1681 = vmatmul.f32.gmra.mxu0 %v1566
        %v1682 = vpop.f32.mrf.mxu0
        %v1683 = vadd.f32 0.0, %v1682
        %1684 = vmatmul.f32.gmra.mxu0 %v1569
        %v1685 = vpop.f32.mrf.mxu0
        %v1686 = vadd.f32 0.0, %v1685
        %1687 = vmatmul.f32.gmra.mxu0 %v1572
        %v1688 = vpop.f32.mrf.mxu0
        %v1689 = vadd.f32 0.0, %v1688
        %1690 = vmatmul.f32.gmra.mxu0 %v1575
        %v1691 = vpop.f32.mrf.mxu0
        %v1692 = vadd.f32 0.0, %v1691
        %1693 = vmatmul.f32.gmra.mxu0 %v1578
        %v1694 = vpop.f32.mrf.mxu0
        %v1695 = vadd.f32 0.0, %v1694
        %1696 = vmatmul.f32.gmra.mxu0 %v1581
        %v1697 = vpop.f32.mrf.mxu0
        %v1698 = vadd.f32 0.0, %v1697
        %1699 = vmatmul.f32.gmra.mxu0 %v1584
        %v1700 = vpop.f32.mrf.mxu0
        %v1701 = vadd.f32 0.0, %v1700
        %1702 = vmatmul.f32.gmra.mxu0 %v1587
        %v1703 = vpop.f32.mrf.mxu0
        %v1704 = vadd.f32 0.0, %v1703
        %1705 = vmatmul.f32.gmra.mxu0 %v1590
        %v1706 = vpop.f32.mrf.mxu0
        %v1707 = vadd.f32 0.0, %v1706
        %1708 = vmatmul.f32.gmra.mxu0 %v1593
        %v1709 = vpop.f32.mrf.mxu0
        %v1710 = vadd.f32 0.0, %v1709
        %1711 = vmatmul.f32.gmra.mxu0 %v1596
        %v1712 = vpop.f32.mrf.mxu0
        %v1713 = vadd.f32 0.0, %v1712
        %1714 = vmatmul.f32.gmra.mxu0 %v1599
        %v1715 = vpop.f32.mrf.mxu0
        %v1716 = vadd.f32 0.0, %v1715
        %1717 = vmatmul.f32.gmra.mxu0 %v1602
        %v1718 = vpop.f32.mrf.mxu0
        %v1719 = vadd.f32 0.0, %v1718
        %1720 = vdwg.mxu0
        %v1721 = vsel %vm1276, %v1626, 0.0
        %v1722 = vsel %vm1276, %v1629, 0.0
        %v1723 = vadd.f32 %v1721, %v1722
        %v1724 = vsel %vm1276, %v1632, 0.0
        %v1725 = vadd.f32 %v1723, %v1724
        %v1726 = vsel %vm1276, %v1635, 0.0
        %v1727 = vadd.f32 %v1725, %v1726
        %v1728 = vsel %vm1276, %v1638, 0.0
        %v1729 = vadd.f32 %v1727, %v1728
        %v1730 = vsel %vm1276, %v1641, 0.0
        %v1731 = vadd.f32 %v1729, %v1730
        %v1732 = vsel %vm1276, %v1644, 0.0
        %v1733 = vadd.f32 %v1731, %v1732
        %v1734 = vsel %vm1276, %v1647, 0.0
        %v1735 = vadd.f32 %v1733, %v1734
        %v1736 = vsel %vm1276, %v1650, 0.0
        %v1737 = vadd.f32 %v1735, %v1736
        %v1738 = vsel %vm1276, %v1653, 0.0
        %v1739 = vadd.f32 %v1737, %v1738
        %v1740 = vsel %vm1276, %v1656, 0.0
        %v1741 = vadd.f32 %v1739, %v1740
        %v1742 = vsel %vm1276, %v1659, 0.0
        %v1743 = vadd.f32 %v1741, %v1742
        %v1744 = vsel %vm1276, %v1662, 0.0
        %v1745 = vadd.f32 %v1743, %v1744
        %v1746 = vsel %vm1276, %v1665, 0.0
        %v1747 = vadd.f32 %v1745, %v1746
        %v1748 = vsel %vm1276, %v1668, 0.0
        %v1749 = vadd.f32 %v1747, %v1748
        %v1750 = vsel %vm1276, %v1671, 0.0
        %v1751 = vadd.f32 %v1749, %v1750
        %v1752 = vsel %vm1276, %v1674, 0.0
        %v1753 = vadd.f32 %v1751, %v1752
        %v1754 = vsel %vm1276, %v1677, 0.0
        %v1755 = vadd.f32 %v1753, %v1754
        %v1756 = vsel %vm1276, %v1680, 0.0
        %v1757 = vadd.f32 %v1755, %v1756
        %v1758 = vsel %vm1276, %v1683, 0.0
        %v1759 = vadd.f32 %v1757, %v1758
        %v1760 = vsel %vm1276, %v1686, 0.0
        %v1761 = vadd.f32 %v1759, %v1760
        %v1762 = vsel %vm1276, %v1689, 0.0
        %v1763 = vadd.f32 %v1761, %v1762
        %v1764 = vsel %vm1276, %v1692, 0.0
        %v1765 = vadd.f32 %v1763, %v1764
        %v1766 = vsel %vm1276, %v1695, 0.0
        %v1767 = vadd.f32 %v1765, %v1766
        %v1768 = vsel %vm1276, %v1698, 0.0
        %v1769 = vadd.f32 %v1767, %v1768
        %v1770 = vsel %vm1276, %v1701, 0.0
        %v1771 = vadd.f32 %v1769, %v1770
        %v1772 = vsel %vm1276, %v1704, 0.0
        %v1773 = vadd.f32 %v1771, %v1772
        %v1774 = vsel %vm1276, %v1707, 0.0
        %v1775 = vadd.f32 %v1773, %v1774
        %v1776 = vsel %vm1276, %v1710, 0.0
        %v1777 = vadd.f32 %v1775, %v1776
        %v1778 = vsel %vm1276, %v1713, 0.0
        %v1779 = vadd.f32 %v1777, %v1778
        %v1780 = vsel %vm1276, %v1716, 0.0
        %v1781 = vadd.f32 %v1779, %v1780
        %v1782 = vsel %vm1276, %v1719, 0.0
        %v1783 = vadd.f32 %v1781, %v1782
        %v1784 = vrot.slane %v1783, 4
        %v1785 = vadd.f32 %v1783, %v1784
        %v1786 = vrot.slane %v1785, 2
        %v1787 = vadd.f32 %v1785, %v1786
        %v1788 = vrot.slane %v1787, 1
        %v1789 = vadd.f32 %v1787, %v1788
        %v1790 = vrcp.pop 256.0
        %v1791 = vmul.f32 256.0, %v1790
        %v1792 = vsub.f32 1.0, %v1791
        %v1793 = vmul.f32 %v1790, %v1792
        %v1794 = vadd.f32 %v1790, %v1793
        %vm1795 = vweird.f32 %v1790
        %v1796 = vsel %vm1795, %v1790, %v1794
        %v1797 = vmul.f32 %v1789, %v1796
        %v1798 = vsub.f32 %v1626, %v1797
        %v1799 = vsub.f32 %v1629, %v1797
        %v1800 = vsub.f32 %v1632, %v1797
        %v1801 = vsub.f32 %v1635, %v1797
        %v1802 = vsub.f32 %v1638, %v1797
        %v1803 = vsub.f32 %v1641, %v1797
        %v1804 = vsub.f32 %v1644, %v1797
        %v1805 = vsub.f32 %v1647, %v1797
        %v1806 = vsub.f32 %v1650, %v1797
        %v1807 = vsub.f32 %v1653, %v1797
        %v1808 = vsub.f32 %v1656, %v1797
        %v1809 = vsub.f32 %v1659, %v1797
        %v1810 = vsub.f32 %v1662, %v1797
        %v1811 = vsub.f32 %v1665, %v1797
        %v1812 = vsub.f32 %v1668, %v1797
        %v1813 = vsub.f32 %v1671, %v1797
        %v1814 = vsub.f32 %v1674, %v1797
        %v1815 = vsub.f32 %v1677, %v1797
        %v1816 = vsub.f32 %v1680, %v1797
        %v1817 = vsub.f32 %v1683, %v1797
        %v1818 = vsub.f32 %v1686, %v1797
        %v1819 = vsub.f32 %v1689, %v1797
        %v1820 = vsub.f32 %v1692, %v1797
        %v1821 = vsub.f32 %v1695, %v1797
        %v1822 = vsub.f32 %v1698, %v1797
        %v1823 = vsub.f32 %v1701, %v1797
        %v1824 = vsub.f32 %v1704, %v1797
        %v1825 = vsub.f32 %v1707, %v1797
        %v1826 = vsub.f32 %v1710, %v1797
        %v1827 = vsub.f32 %v1713, %v1797
        %v1828 = vsub.f32 %v1716, %v1797
        %v1829 = vsub.f32 %v1719, %v1797
        %v1830 = vmul.f32 %v1798, %v1798
        %v1831 = vmul.f32 %v1799, %v1799
        %v1832 = vmul.f32 %v1800, %v1800
        %v1833 = vmul.f32 %v1801, %v1801
        %v1834 = vmul.f32 %v1802, %v1802
        %v1835 = vmul.f32 %v1803, %v1803
        %v1836 = vmul.f32 %v1804, %v1804
        %v1837 = vmul.f32 %v1805, %v1805
        %v1838 = vmul.f32 %v1806, %v1806
        %v1839 = vmul.f32 %v1807, %v1807
        %v1840 = vmul.f32 %v1808, %v1808
        %v1841 = vmul.f32 %v1809, %v1809
        %v1842 = vmul.f32 %v1810, %v1810
        %v1843 = vmul.f32 %v1811, %v1811
        %v1844 = vmul.f32 %v1812, %v1812
        %v1845 = vmul.f32 %v1813, %v1813
        %v1846 = vmul.f32 %v1814, %v1814
        %v1847 = vmul.f32 %v1815, %v1815
        %v1848 = vmul.f32 %v1816, %v1816
        %v1849 = vmul.f32 %v1817, %v1817
        %v1850 = vmul.f32 %v1818, %v1818
        %v1851 = vmul.f32 %v1819, %v1819
        %v1852 = vmul.f32 %v1820, %v1820
        %v1853 = vmul.f32 %v1821, %v1821
        %v1854 = vmul.f32 %v1822, %v1822
        %v1855 = vmul.f32 %v1823, %v1823
        %v1856 = vmul.f32 %v1824, %v1824
        %v1857 = vmul.f32 %v1825, %v1825
        %v1858 = vmul.f32 %v1826, %v1826
        %v1859 = vmul.f32 %v1827, %v1827
        %v1860 = vmul.f32 %v1828, %v1828
        %v1861 = vmul.f32 %v1829, %v1829
        %v1862 = vsel %vm1276, %v1830, 0.0
        %v1863 = vsel %vm1276, %v1831, 0.0
        %v1864 = vadd.f32 %v1862, %v1863
        %v1865 = vsel %vm1276, %v1832, 0.0
        %v1866 = vadd.f32 %v1864, %v1865
        %v1867 = vsel %vm1276, %v1833, 0.0
        %v1868 = vadd.f32 %v1866, %v1867
        %v1869 = vsel %vm1276, %v1834, 0.0
        %v1870 = vadd.f32 %v1868, %v1869
        %v1871 = vsel %vm1276, %v1835, 0.0
        %v1872 = vadd.f32 %v1870, %v1871
        %v1873 = vsel %vm1276, %v1836, 0.0
        %v1874 = vadd.f32 %v1872, %v1873
        %v1875 = vsel %vm1276, %v1837, 0.0
        %v1876 = vadd.f32 %v1874, %v1875
        %v1877 = vsel %vm1276, %v1838, 0.0
        %v1878 = vadd.f32 %v1876, %v1877
        %v1879 = vsel %vm1276, %v1839, 0.0
        %v1880 = vadd.f32 %v1878, %v1879
        %v1881 = vsel %vm1276, %v1840, 0.0
        %v1882 = vadd.f32 %v1880, %v1881
        %v1883 = vsel %vm1276, %v1841, 0.0
        %v1884 = vadd.f32 %v1882, %v1883
        %v1885 = vsel %vm1276, %v1842, 0.0
        %v1886 = vadd.f32 %v1884, %v1885
        %v1887 = vsel %vm1276, %v1843, 0.0
        %v1888 = vadd.f32 %v1886, %v1887
        %v1889 = vsel %vm1276, %v1844, 0.0
        %v1890 = vadd.f32 %v1888, %v1889
        %v1891 = vsel %vm1276, %v1845, 0.0
        %v1892 = vadd.f32 %v1890, %v1891
        %v1893 = vsel %vm1276, %v1846, 0.0
        %v1894 = vadd.f32 %v1892, %v1893
        %v1895 = vsel %vm1276, %v1847, 0.0
        %v1896 = vadd.f32 %v1894, %v1895
        %v1897 = vsel %vm1276, %v1848, 0.0
        %v1898 = vadd.f32 %v1896, %v1897
        %v1899 = vsel %vm1276, %v1849, 0.0
        %v1900 = vadd.f32 %v1898, %v1899
        %v1901 = vsel %vm1276, %v1850, 0.0
        %v1902 = vadd.f32 %v1900, %v1901
        %v1903 = vsel %vm1276, %v1851, 0.0
        %v1904 = vadd.f32 %v1902, %v1903
        %v1905 = vsel %vm1276, %v1852, 0.0
        %v1906 = vadd.f32 %v1904, %v1905
        %v1907 = vsel %vm1276, %v1853, 0.0
        %v1908 = vadd.f32 %v1906, %v1907
        %v1909 = vsel %vm1276, %v1854, 0.0
        %v1910 = vadd.f32 %v1908, %v1909
        %v1911 = vsel %vm1276, %v1855, 0.0
        %v1912 = vadd.f32 %v1910, %v1911
        %v1913 = vsel %vm1276, %v1856, 0.0
        %v1914 = vadd.f32 %v1912, %v1913
        %v1915 = vsel %vm1276, %v1857, 0.0
        %v1916 = vadd.f32 %v1914, %v1915
        %v1917 = vsel %vm1276, %v1858, 0.0
        %v1918 = vadd.f32 %v1916, %v1917
        %v1919 = vsel %vm1276, %v1859, 0.0
        %v1920 = vadd.f32 %v1918, %v1919
        %v1921 = vsel %vm1276, %v1860, 0.0
        %v1922 = vadd.f32 %v1920, %v1921
        %v1923 = vsel %vm1276, %v1861, 0.0
        %v1924 = vadd.f32 %v1922, %v1923
        %v1925 = vrot.slane %v1924, 4
        %v1926 = vadd.f32 %v1924, %v1925
        %v1927 = vrot.slane %v1926, 2
        %v1928 = vadd.f32 %v1926, %v1927
        %v1929 = vrot.slane %v1928, 1
        %v1930 = vadd.f32 %v1928, %v1929
        %v1931 = vadd.f32 %v1797, 0.0
        %v1932 = vadd.f32 %v1930, 0.0
        %v1933 = vmul.f32 %v1797, %v1797
        %v1934 = vmul.f32 %v1933, 0.0
        %v1935 = vadd.f32 %v1932, %v1934
        %1936 = vxpose.xlu0.b32.start [1/16] %v1626, 128
        %1937 = vxpose.xlu0.b32.cont [2/16] %v1629, 128
        %1938 = vxpose.xlu0.b32.cont [3/16] %v1632, 128
        %1939 = vxpose.xlu0.b32.cont [4/16] %v1635, 128
        %1940 = vxpose.xlu0.b32.cont [5/16] %v1638, 128
        %1941 = vxpose.xlu0.b32.cont [6/16] %v1641, 128
        %1942 = vxpose.xlu0.b32.cont [7/16] %v1644, 128
        %1943 = vxpose.xlu0.b32.cont [8/16] %v1647, 128
        %1944 = vxpose.xlu0.b32.cont [9/16] %v1650, 128
        %1945 = vxpose.xlu0.b32.cont [10/16] %v1653, 128
        %1946 = vxpose.xlu0.b32.cont [11/16] %v1656, 128
        %1947 = vxpose.xlu0.b32.cont [12/16] %v1659, 128
        %1948 = vxpose.xlu0.b32.cont [13/16] %v1662, 128
        %1949 = vxpose.xlu0.b32.cont [14/16] %v1665, 128
        %1950 = vxpose.xlu0.b32.cont [15/16] %v1668, 128
        %1951 = vxpose.xlu0.b32.end [16/16] %v1671, 128
        %v1952 = vpop.trf.xlu0
        %v1953 = vpop.trf.xlu0
        %v1954 = vpop.trf.xlu0
        %v1955 = vpop.trf.xlu0
        %v1956 = vpop.trf.xlu0
        %v1957 = vpop.trf.xlu0
        %v1958 = vpop.trf.xlu0
        %v1959 = vpop.trf.xlu0
        %v1960 = vpop.trf.xlu0
        %v1961 = vpop.trf.xlu0
        %v1962 = vpop.trf.xlu0
        %v1963 = vpop.trf.xlu0
        %v1964 = vpop.trf.xlu0
        %v1965 = vpop.trf.xlu0
        %v1966 = vpop.trf.xlu0
        %v1967 = vpop.trf.xlu0
        %1968 = vxpose.xlu0.b32.start [1/16] %v1674, 128
        %1969 = vxpose.xlu0.b32.cont [2/16] %v1677, 128
        %1970 = vxpose.xlu0.b32.cont [3/16] %v1680, 128
        %1971 = vxpose.xlu0.b32.cont [4/16] %v1683, 128
        %1972 = vxpose.xlu0.b32.cont [5/16] %v1686, 128
        %1973 = vxpose.xlu0.b32.cont [6/16] %v1689, 128
        %1974 = vxpose.xlu0.b32.cont [7/16] %v1692, 128
        %1975 = vxpose.xlu0.b32.cont [8/16] %v1695, 128
        %1976 = vxpose.xlu0.b32.cont [9/16] %v1698, 128
        %1977 = vxpose.xlu0.b32.cont [10/16] %v1701, 128
        %1978 = vxpose.xlu0.b32.cont [11/16] %v1704, 128
        %1979 = vxpose.xlu0.b32.cont [12/16] %v1707, 128
        %1980 = vxpose.xlu0.b32.cont [13/16] %v1710, 128
        %1981 = vxpose.xlu0.b32.cont [14/16] %v1713, 128
        %1982 = vxpose.xlu0.b32.cont [15/16] %v1716, 128
        %1983 = vxpose.xlu0.b32.end [16/16] %v1719, 128
        %v1984 = vpop.trf.xlu0
        %v1985 = vpop.trf.xlu0
        %v1986 = vpop.trf.xlu0
        %v1987 = vpop.trf.xlu0
        %v1988 = vpop.trf.xlu0
        %v1989 = vpop.trf.xlu0
        %v1990 = vpop.trf.xlu0
        %v1991 = vpop.trf.xlu0
        %v1992 = vpop.trf.xlu0
        %v1993 = vpop.trf.xlu0
        %v1994 = vpop.trf.xlu0
        %v1995 = vpop.trf.xlu0
        %v1996 = vpop.trf.xlu0
        %v1997 = vpop.trf.xlu0
        %v1998 = vpop.trf.xlu0
        %v1999 = vpop.trf.xlu0
        %2000 = vst [vmem:[%s167] sm:$0xff] %v1952
        %2001 = vst [vmem:[%s167 + $0x8] sm:$0xff] %v1984
        %vm2002 = vcmask 1040384
        %v2003 = vsel %vm2002, %v1931, %v1935
        %vm2004 = vcmask 58368
        %2005 = vst.msk [vmem:[%s174] sm:$0x3] %vm2004, %v2003
        %s2006 = sand.u32 %s76, 1
        %s2007 = scalar_lea.sflag [#allocation3], %s2006
        %s2008 = sand.u32 %s76, 1
        %s2009 = smul.addr %s2008, 16
        %s2010 = scalar_lea.vmem [#allocation2], %s2009
        %s2011 = sand.u32 %s102, 1
        %s2012 = scalar_lea.sflag [#allocation5], %s2011
        %s2013 = sand.u32 %s102, 1
        %s2014 = smul.addr %s2013, 2
        %s2015 = scalar_lea.vmem [#allocation4], %s2014
        // Predicated region
        $region29: #{tpu_custom_call.1} parent=27 // pred_check
          %p2016 = pneg %p86
        $region30: #{tpu_custom_call.1} parent=27 // pred_check_branch
          %2018 = sbr.rel (%p2016) target = $region32
        $region31: #{tpu_custom_call.1} parent=27 // pred_region
          %2020 = vsyncadd %s2007, 0
          %s2021 = smul.addr %s21, 2
          %s2022 = smul.addr %s2021, 8
          %s2023 = scalar_lea.hbm %s2, %s2022
          %s2025 = sshll.u32 %s2010, 4
          %s2026 = int_to_ptr.vmem [resolvable:$true] %s2025
          %s2027 = sshll.u32 %s2023, 4
          %s2028 = int_to_ptr.hbm [resolvable:$true] %s2027
          %2030 = dma.vmem_to_hbm [thread:$0]  %s2026, 256, %s2028, %s2007
        $region32: #{tpu_custom_call.1} parent=27 // pred_fallthru
          _
        // Predicated region
        $region33: #{tpu_custom_call.1} parent=27 // pred_check
          %p2031 = pneg %p112
        $region34: #{tpu_custom_call.1} parent=27 // pred_check_branch
          %2033 = sbr.rel (%p2031) target = $region36
        $region35: #{tpu_custom_call.1} parent=27 // pred_region
          %2035 = vsyncadd %s2012, 0
          %s2036 = smul.addr %s21, 2
          %s2037 = scalar_lea.hbm %s3, %s2036
          %s2039 = sshll.u32 %s2015, 4
          %s2040 = int_to_ptr.vmem [resolvable:$true] %s2039
          %s2041 = sshll.u32 %s2037, 4
          %s2042 = int_to_ptr.hbm [resolvable:$true] %s2041
          %2044 = dma.vmem_to_hbm [thread:$0]  %s2040, 32, %s2042, %s2012
        $region36: #{tpu_custom_call.1} parent=27 // pred_fallthru
          _
      $region28: #{tpu_custom_call.1} parent=5 // pred_fallthru
        _
      %p2045 = scmp.le.s32.totalorder 2, %s16
      // Predicated region
      $region37: #{tpu_custom_call.1} parent=5 // pred_check
        %p2046 = pneg %p2045
      $region38: #{tpu_custom_call.1} parent=5 // pred_check_branch
        %2048 = sbr.rel (%p2046) target = $region40
      $region39: #{tpu_custom_call.1} parent=5 // pred_region
        %s2049 = ssub.s32 %s16, 2
        // Predicated region
        $region41: #{tpu_custom_call.1} parent=39 // pred_check
          %p2050 = pneg %p92
        $region42: #{tpu_custom_call.1} parent=39 // pred_check_branch
          %2052 = sbr.rel (%p2050) target = $region44
        $region43: #{tpu_custom_call.1} parent=39 // pred_region
          %s2053 = sand.u32 %s77, 1
          %s2054 = scalar_lea.sflag [#allocation3], %s2053
          %s2055 = sand.u32 %s77, 1
          %s2056 = smul.addr %s2055, 16
          %s2057 = scalar_lea.vmem [#allocation2], %s2056
          %2059 = dma.done %s2054, 256
        $region44: #{tpu_custom_call.1} parent=39 // pred_fallthru
          _
        // Predicated region
        $region45: #{tpu_custom_call.1} parent=39 // pred_check
          %p2060 = pneg %p118
        $region46: #{tpu_custom_call.1} parent=39 // pred_check_branch
          %2062 = sbr.rel (%p2060) target = $region48
        $region47: #{tpu_custom_call.1} parent=39 // pred_region
          %s2063 = sand.u32 %s103, 1
          %s2064 = scalar_lea.sflag [#allocation5], %s2063
          %s2065 = sand.u32 %s103, 1
          %s2066 = smul.addr %s2065, 2
          %s2067 = scalar_lea.vmem [#allocation4], %s2066
          %2069 = dma.done %s2064, 32
        $region48: #{tpu_custom_call.1} parent=39 // pred_fallthru
          _
      $region40: #{tpu_custom_call.1} parent=5 // pred_fallthru
        _
    $region6: #{tpu_custom_call.1} parent=1 // loop_footer
      %s20 = sadd.s32 1, %s16
    $region7: #{tpu_custom_call.1} parent=1 // loop_footer_branch
      %15 = sbr.rel target = $region3
    $region8: #{tpu_custom_call.1} parent=1 // loop_exit
      _
    %2070 = vsyncpa [#allocation3], 1
    %s2071 = scalar_lea.sflag [#allocation3], 1
    %2072 = vsyncpa %s2071, 1
    %2073 = vsyncpa [#allocation5], 1
    %s2074 = scalar_lea.sflag [#allocation5], 1
    %2075 = vsyncpa %s2074, 1

</llo_original>
